<compile_context>
chip_gen: v7x
topology: tpu7x:2x2x1
jax: 0.10.0
libtpu: 0.0.40
codegen_flags: <defaults>
</compile_context>

<pallas_src>
import jax
import jax.numpy as jnp
from jax.experimental import pallas as pl
from jax.experimental.pallas import tpu as pltpu


def _make_kernel(Bb, T, Cin, F, K, n_blocks, L, Lp):
    f32 = jnp.float32
    P_max = max((2 ** (i % 8)) * (K - 1) for i in range(n_blocks))
    inv_L = 1.0 / L

    def kernel(x_ref, w_emb_ref, b_emb_ref, w_init_ref, b_init_ref,
               wdfg_ref, wr_ref, b_blk_ref, w_fc_ref, b_fc_ref, out_ref):
        # ---- NCT block -> (Bb*T, Cin) in registers, then Linear(Cin -> F) ----
        x_tc = jnp.transpose(x_ref[...], (0, 2, 1)).reshape(Bb * T, Cin)
        h = jnp.dot(x_tc, w_emb_ref[...], preferred_element_type=f32) + b_emb_ref[...]
        h = h.reshape(Bb, T, F)

        # ---- F.pad(x, (1, 0)) + initial Conv1d(F, F, K): one im2col matmul.
        #      BN is pre-folded into w_init/b_init; ReLU; dropout = identity. ----
        pieces = [jnp.zeros((Bb, 1, F), f32), h]
        if Lp > L:
            pieces.append(jnp.zeros((Bb, Lp - L, F), f32))      # tail pad to Lp rows
        hp = jnp.concatenate(pieces, axis=1)                     # (Bb, Lp + K - 1, F)
        cols = jnp.concatenate([hp[:, k:k + Lp, :] for k in range(K)],
                               axis=-1).reshape(Bb * Lp, K * F)
        xcur = jnp.maximum(
            jnp.dot(cols, w_init_ref[...], preferred_element_type=f32) + b_init_ref[...],
            0.0)                                                 # (Bb*Lp, F)

        # Causal zero pad built once (P_max rows) and sliced per dilation below.
        pad_max = jnp.zeros((Bb, P_max, F), f32)

        # ---- residual dilated-gated blocks ----
        skip = None
        for i in range(n_blocks):                 # n_blocks small & static
            d = 2 ** (i % 8)
            P = d * (K - 1)                       # causal left padding
            off = P_max - P
            residual = xcur
            xp = jnp.concatenate([pad_max, xcur.reshape(Bb, Lp, F)], axis=1)
            cols = jnp.concatenate(
                [xp[:, off + k * d: off + k * d + Lp, :] for k in range(K)],
                axis=-1).reshape(Bb * Lp, K * F)
            b_row = b_blk_ref[i:i + 1, :]                        # (1, 3F)
            # Fused filter+gate conv: one matmul with K*F-wide contraction and
            # 2F output lanes, then static lane slices for tanh / sigmoid.
            fg = jnp.dot(cols, wdfg_ref[i], preferred_element_type=f32) \
                + b_row[:, :2 * F]
            z = jnp.tanh(fg[:, :F]) * jax.nn.sigmoid(fg[:, F:2 * F])
            # 1x1 res_conv with its BatchNorm folded in; dropout = identity.
            z = jnp.dot(z, wr_ref[i], preferred_element_type=f32) + b_row[:, 2 * F:3 * F]
            xcur = z + residual
            skip = xcur if skip is None else skip + xcur

        # ---- AdaptiveAvgPool1d(1): masked per-sample sublane reduce (the mask
        #      zeroes the junk tail rows t >= L), then fc; one dense store. ----
        skip3 = skip.reshape(Bb, Lp, F)
        if Lp > L:
            t_idx = jax.lax.broadcasted_iota(jnp.int32, (Bb, Lp, F), 1)
            skip3 = jnp.where(t_idx < L, skip3, 0.0)
        pooled = jnp.sum(skip3, axis=1) * inv_L                  # (Bb, F)
        out = jnp.dot(pooled, w_fc_ref[...], preferred_element_type=f32) + b_fc_ref[...]
        out_ref[...] = out.astype(out_ref.dtype)

    return kernel


def _num_tensorcores():
    """Best-effort TensorCores-per-device (2 on v7x-class parts, else 1)."""
    try:
        n = getattr(jax.devices()[0], "num_cores", None)
        return max(1, int(n)) if n else 1
    except Exception:
        return 1


def enhanced_resnet_forward(x_nct, params, batch_block=None):
    """x_nct: (B, input_dim, T) float32, PyTorch NCT layout (not pre-transposed)."""
    B, Cin, T = x_nct.shape
    x = x_nct.astype(jnp.float32)                 # stays NCT; relayout in-kernel

    KF, F = params["w_init"].shape                # (K*F, F)
    K = KF // F
    n_blocks = params["wdfg"].shape[0]
    out_dim = params["w_fc"].shape[1]
    L = T - K + 2                                 # length after pad(1,0) + valid conv
    assert L >= 1, "time_steps too short for kernel_size"
    Lp = ((L + 7) // 8) * 8                       # pad rows to a sublane multiple
    P_max = max((2 ** (i % 8)) * (K - 1) for i in range(n_blocks))

    weight_args = (params["w_emb"], params["b_emb"],
                   params["w_init"], params["b_init"],
                   params["wdfg"], params["wr"], params["b_blk"],
                   params["w_fc"], params["b_fc"])
    weight_bytes = sum(int(a.size) * a.dtype.itemsize for a in weight_args)

    # ---- generation-aware batch blocking -------------------------------------
    # Valid Bb: divides B and keeps the (Bb, out_dim) output block sublane-legal.
    def _valid_bb(bb):
        return bb >= 1 and B % bb == 0 and (bb == B or bb % 8 == 0)
    valid = [bb for bb in range(1, B + 1) if _valid_bb(bb)]

    if batch_block is not None:
        fitting = [bb for bb in valid if bb <= min(batch_block, B)]
        Bb = max(fitting) if fitting else min(valid)
    else:
        Bb = B                                    # v5e/v6e: one fused grid step
        if _num_tensorcores() > 1:                # v7x: >=2 steps -> both TCs busy
            smaller = [bb for bb in valid if bb <= B // 2]
            if smaller:
                Bb = max(smaller)

    # Rough per-step VMEM working-set estimate; shrink Bb if it would blow the
    # 64 MiB budget of v7x (also keeps v5e/v6e comfortably inside 128 MiB).
    def _step_vmem_bytes(bb):
        act = bb * Lp * F * 4                     # one (Bb*Lp, F) f32 slab
        return (2 * weight_bytes                  # double-buffered weight windows
                + 2 * bb * Cin * T * 4            # double-buffered input window
                + act * (K + 6)                   # im2col cols + h/xp/xcur/skip/z
                + bb * (P_max + K) * F * 4)       # causal + front pads
    VMEM_BUDGET = 48 << 20
    while _step_vmem_bytes(Bb) > VMEM_BUDGET:
        smaller = [bb for bb in valid if bb < Bb]
        if not smaller:
            break
        Bb = max(smaller)
    vmem_limit = int(min(max(2 * _step_vmem_bytes(Bb), 32 << 20), 64 << 20))

    args = (x,) + weight_args

    def _full(a):
        nd = a.ndim
        return pl.BlockSpec(a.shape, lambda g, _nd=nd: (0,) * _nd)

    in_specs = [pl.BlockSpec((Bb, Cin, T), lambda g: (g, 0, 0))]
    in_specs += [_full(a) for a in args[1:]]

    kernel = _make_kernel(Bb, T, Cin, F, K, n_blocks, L, Lp)
    return pl.pallas_call(
        kernel,
        out_shape=jax.ShapeDtypeStruct((B, out_dim), jnp.float32),
        grid=(B // Bb,),
        in_specs=in_specs,
        out_specs=pl.BlockSpec((Bb, out_dim), lambda g: (g, 0)),
        compiler_params=pltpu.CompilerParams(
            dimension_semantics=("parallel",),
            vmem_limit_bytes=vmem_limit),
    )(*args)


def make_params(key, input_dim, base_filters, n_blocks, kernel_size, output_dim):
    """Deterministic synthetic parameters matching the module's shapes.

    Conv weights are stored im2col-ready with eval-mode BatchNorm pre-folded:
      * initial conv -> (K*F, F)   row index = k*F + c_in (PyTorch (C_out,C_in,K)
                                   weight permuted (2,1,0) then reshaped), scaled
                                   by the BN scale; bias absorbs the BN shift.
      * dilated conv -> filter & gate halves fused on the output axis:
                        (n_blocks, K*F, 2F)  (out channels [0:F] | [F:2F]).
      * 1x1 res_conv -> (n_blocks, F, F) == (C_in, C_out), BN folded in.
      * per-block biases packed as (n_blocks, 3F) = [bd_filter | bd_gate | br_folded].
      * Linear       -> (in, out).
    BN folding uses default running stats (mean=0, var=1, gamma=1, beta=0, eps=1e-5):
      scale = gamma / sqrt(var + eps), shift = beta - mean * scale.
    """
    F, K = base_filters, kernel_size
    ks = jax.random.split(key, 12)
    r = lambda k, s: (0.1 * jax.random.normal(k, s)).astype(jnp.float32)

    eps = 1e-5
    bn_mean = jnp.zeros((F,), jnp.float32)
    bn_var = jnp.ones((F,), jnp.float32)
    bn_gamma = jnp.ones((F,), jnp.float32)
    bn_beta = jnp.zeros((F,), jnp.float32)
    bn_scale = bn_gamma / jnp.sqrt(bn_var + eps)          # per out-channel
    bn_shift = bn_beta - bn_mean * bn_scale

    # initial conv + its BN folded in
    w_init = r(ks[2], (K * F, F)) * bn_scale[None, :]
    b_init = r(ks[3], (1, F)) * bn_scale[None, :] + bn_shift[None, :]

    # dilated conv: filter & gate fused along output axis
    wdfg = jnp.concatenate([r(ks[4], (n_blocks, K * F, F)),
                            r(ks[5], (n_blocks, K * F, F))], axis=-1)
    bd_f = r(ks[6], (n_blocks, F))
    bd_g = r(ks[7], (n_blocks, F))

    # 1x1 res_conv + its BN folded in
    wr = r(ks[8], (n_blocks, F, F)) * bn_scale[None, None, :]
    br = r(ks[9], (n_blocks, F)) * bn_scale[None, :] + bn_shift[None, :]

    # per-block bias pack: [bd_f | bd_g | br_folded]
    b_blk = jnp.concatenate([bd_f, bd_g, br], axis=-1)    # (n_blocks, 3F)

    return dict(
        w_emb=r(ks[0], (input_dim, F)),
        b_emb=r(ks[1], (1, F)),
        w_init=w_init, b_init=b_init,
        wdfg=wdfg, wr=wr, b_blk=b_blk,
        w_fc=r(ks[10], (F, output_dim)),
        b_fc=r(ks[11], (1, output_dim)),
    )


if __name__ == "__main__":
    # Small shapes consistent with the module:
    #   input_dim=11, base_filters=32, n_blocks=3, kernel_size=8, output_dim=2
    B, input_dim, T = 2, 11, 24
    base_filters, n_blocks, kernel_size, output_dim = 32, 3, 8, 2

    key = jax.random.PRNGKey(0)
    kp, kx = jax.random.split(key)
    params = make_params(kp, input_dim, base_filters, n_blocks, kernel_size, output_dim)
    x = jax.random.normal(kx, (B, input_dim, T), dtype=jnp.float32)   # NCT like PyTorch

    out = enhanced_resnet_forward(x, params)
    out = jax.block_until_ready(out)
    assert out.shape == (B, output_dim), out.shape
    print("KERNEL_OK")
</pallas_src>

<mosaic_0001>
module attributes {stable_mosaic.version = 11 : i64} {
  func.func @kernel(%arg0: i32, %arg1: memref<2x11x24xf32, #tpu.memory_space<vmem>>, %arg2: memref<11x32xf32, #tpu.memory_space<vmem>>, %arg3: memref<1x32xf32, #tpu.memory_space<vmem>>, %arg4: memref<256x32xf32, #tpu.memory_space<vmem>>, %arg5: memref<1x32xf32, #tpu.memory_space<vmem>>, %arg6: memref<3x256x64xf32, #tpu.memory_space<vmem>>, %arg7: memref<3x32x32xf32, #tpu.memory_space<vmem>>, %arg8: memref<3x96xf32, #tpu.memory_space<vmem>>, %arg9: memref<32x2xf32, #tpu.memory_space<vmem>>, %arg10: memref<1x2xf32, #tpu.memory_space<vmem>>, %arg11: memref<2x2xf32, #tpu.memory_space<vmem>>) attributes {dimension_semantics = [#tpu.dimension_semantics<parallel>], iteration_bounds = array<i64: 1>, scalar_prefetch = 0 : i64, scratch_operands = 0 : i64, tpu.core_type = #tpu.core_type<tc>, window_params = [{transform_indices = @transform_0, window_bounds = array<i64: 2, 11, 24>}, {pipeline_mode = #tpu.pipeline_mode<synchronous>, transform_indices = @transform_1, window_bounds = array<i64: 11, 32>}, {pipeline_mode = #tpu.pipeline_mode<synchronous>, transform_indices = @transform_2, window_bounds = array<i64: 1, 32>}, {pipeline_mode = #tpu.pipeline_mode<synchronous>, transform_indices = @transform_3, window_bounds = array<i64: 256, 32>}, {pipeline_mode = #tpu.pipeline_mode<synchronous>, transform_indices = @transform_4, window_bounds = array<i64: 1, 32>}, {pipeline_mode = #tpu.pipeline_mode<synchronous>, transform_indices = @transform_5, window_bounds = array<i64: 3, 256, 64>}, {pipeline_mode = #tpu.pipeline_mode<synchronous>, transform_indices = @transform_6, window_bounds = array<i64: 3, 32, 32>}, {pipeline_mode = #tpu.pipeline_mode<synchronous>, transform_indices = @transform_7, window_bounds = array<i64: 3, 96>}, {pipeline_mode = #tpu.pipeline_mode<synchronous>, transform_indices = @transform_8, window_bounds = array<i64: 32, 2>}, {pipeline_mode = #tpu.pipeline_mode<synchronous>, transform_indices = @transform_9, window_bounds = array<i64: 1, 2>}, {transform_indices = @transform_10, window_bounds = array<i64: 2, 2>}]} {
    %c0 = arith.constant 0 : index
    %c0_0 = arith.constant 0 : index
    %c0_1 = arith.constant 0 : index
    %0 = vector.load %arg1[%c0, %c0_0, %c0_1] : memref<2x11x24xf32, #tpu.memory_space<vmem>>, vector<2x11x24xf32>
    %1 = tpu.transpose %0, [0, 2, 1] : vector<2x11x24xf32> -> vector<2x24x11xf32>
    %2 = vector.shape_cast %1 : vector<2x24x11xf32> to vector<48x11xf32>
    %c0_2 = arith.constant 0 : index
    %c0_3 = arith.constant 0 : index
    %3 = vector.load %arg2[%c0_2, %c0_3] : memref<11x32xf32, #tpu.memory_space<vmem>>, vector<11x32xf32>
    %cst = arith.constant dense<0.000000e+00> : vector<48x32xf32>
    %4 = tpu.matmul %2, %3, %cst {dimension_numbers = #tpu.dot_dimension_numbers<[1], [0], [0], [1], [0, 0, 1, 1], [], []>} : vector<48x11xf32>, vector<11x32xf32>, vector<48x32xf32> -> vector<48x32xf32>
    %c0_4 = arith.constant 0 : index
    %c0_5 = arith.constant 0 : index
    %5 = vector.load %arg3[%c0_4, %c0_5] : memref<1x32xf32, #tpu.memory_space<vmem>>, vector<1x32xf32>
    %6 = vector.broadcast %5 : vector<1x32xf32> to vector<48x32xf32>
    %7 = arith.addf %4, %6 : vector<48x32xf32>
    %8 = vector.shape_cast %7 : vector<48x32xf32> to vector<2x24x32xf32>
    %cst_6 = arith.constant 0.000000e+00 : f32
    %9 = vector.broadcast %cst_6 : f32 to vector<2x1x32xf32>
    %cst_7 = arith.constant 0.000000e+00 : f32
    %10 = vector.broadcast %cst_7 : f32 to vector<2x6x32xf32>
    %11 = tpu.concatenate %9, %8, %10 in 1 : vector<2x1x32xf32>, vector<2x24x32xf32>, vector<2x6x32xf32> -> vector<2x31x32xf32>
    %12 = vector.extract_strided_slice %11 {offsets = [0, 0, 0], sizes = [2, 24, 32], strides = [1, 1, 1]} : vector<2x31x32xf32> to vector<2x24x32xf32>
    %13 = vector.extract_strided_slice %11 {offsets = [0, 1, 0], sizes = [2, 24, 32], strides = [1, 1, 1]} : vector<2x31x32xf32> to vector<2x24x32xf32>
    %14 = vector.extract_strided_slice %11 {offsets = [0, 2, 0], sizes = [2, 24, 32], strides = [1, 1, 1]} : vector<2x31x32xf32> to vector<2x24x32xf32>
    %15 = vector.extract_strided_slice %11 {offsets = [0, 3, 0], sizes = [2, 24, 32], strides = [1, 1, 1]} : vector<2x31x32xf32> to vector<2x24x32xf32>
    %16 = vector.extract_strided_slice %11 {offsets = [0, 4, 0], sizes = [2, 24, 32], strides = [1, 1, 1]} : vector<2x31x32xf32> to vector<2x24x32xf32>
    %17 = vector.extract_strided_slice %11 {offsets = [0, 5, 0], sizes = [2, 24, 32], strides = [1, 1, 1]} : vector<2x31x32xf32> to vector<2x24x32xf32>
    %18 = vector.extract_strided_slice %11 {offsets = [0, 6, 0], sizes = [2, 24, 32], strides = [1, 1, 1]} : vector<2x31x32xf32> to vector<2x24x32xf32>
    %19 = vector.extract_strided_slice %11 {offsets = [0, 7, 0], sizes = [2, 24, 32], strides = [1, 1, 1]} : vector<2x31x32xf32> to vector<2x24x32xf32>
    %20 = tpu.concatenate %12, %13, %14, %15, %16, %17, %18, %19 in 2 : vector<2x24x32xf32>, vector<2x24x32xf32>, vector<2x24x32xf32>, vector<2x24x32xf32>, vector<2x24x32xf32>, vector<2x24x32xf32>, vector<2x24x32xf32>, vector<2x24x32xf32> -> vector<2x24x256xf32>
    %21 = vector.shape_cast %20 : vector<2x24x256xf32> to vector<48x256xf32>
    %c0_8 = arith.constant 0 : index
    %c0_9 = arith.constant 0 : index
    %22 = vector.load %arg4[%c0_8, %c0_9] : memref<256x32xf32, #tpu.memory_space<vmem>>, vector<256x32xf32>
    %cst_10 = arith.constant dense<0.000000e+00> : vector<48x32xf32>
    %23 = tpu.matmul %21, %22, %cst_10 {dimension_numbers = #tpu.dot_dimension_numbers<[1], [0], [0], [1], [0, 0, 1, 1], [], []>} : vector<48x256xf32>, vector<256x32xf32>, vector<48x32xf32> -> vector<48x32xf32>
    %c0_11 = arith.constant 0 : index
    %c0_12 = arith.constant 0 : index
    %24 = vector.load %arg5[%c0_11, %c0_12] : memref<1x32xf32, #tpu.memory_space<vmem>>, vector<1x32xf32>
    %25 = vector.broadcast %24 : vector<1x32xf32> to vector<48x32xf32>
    %26 = arith.addf %23, %25 : vector<48x32xf32>
    %cst_13 = arith.constant 0.000000e+00 : f32
    %27 = vector.broadcast %cst_13 : f32 to vector<48x32xf32>
    %28 = arith.maximumf %26, %27 : vector<48x32xf32>
    %cst_14 = arith.constant 0.000000e+00 : f32
    %29 = vector.broadcast %cst_14 : f32 to vector<2x28x32xf32>
    %30 = vector.shape_cast %28 : vector<48x32xf32> to vector<2x24x32xf32>
    %31 = tpu.concatenate %29, %30 in 1 : vector<2x28x32xf32>, vector<2x24x32xf32> -> vector<2x52x32xf32>
    %32 = vector.extract_strided_slice %31 {offsets = [0, 21, 0], sizes = [2, 24, 32], strides = [1, 1, 1]} : vector<2x52x32xf32> to vector<2x24x32xf32>
    %33 = vector.extract_strided_slice %31 {offsets = [0, 22, 0], sizes = [2, 24, 32], strides = [1, 1, 1]} : vector<2x52x32xf32> to vector<2x24x32xf32>
    %34 = vector.extract_strided_slice %31 {offsets = [0, 23, 0], sizes = [2, 24, 32], strides = [1, 1, 1]} : vector<2x52x32xf32> to vector<2x24x32xf32>
    %35 = vector.extract_strided_slice %31 {offsets = [0, 24, 0], sizes = [2, 24, 32], strides = [1, 1, 1]} : vector<2x52x32xf32> to vector<2x24x32xf32>
    %36 = vector.extract_strided_slice %31 {offsets = [0, 25, 0], sizes = [2, 24, 32], strides = [1, 1, 1]} : vector<2x52x32xf32> to vector<2x24x32xf32>
    %37 = vector.extract_strided_slice %31 {offsets = [0, 26, 0], sizes = [2, 24, 32], strides = [1, 1, 1]} : vector<2x52x32xf32> to vector<2x24x32xf32>
    %38 = vector.extract_strided_slice %31 {offsets = [0, 27, 0], sizes = [2, 24, 32], strides = [1, 1, 1]} : vector<2x52x32xf32> to vector<2x24x32xf32>
    %39 = vector.extract_strided_slice %31 {offsets = [0, 28, 0], sizes = [2, 24, 32], strides = [1, 1, 1]} : vector<2x52x32xf32> to vector<2x24x32xf32>
    %40 = tpu.concatenate %32, %33, %34, %35, %36, %37, %38, %39 in 2 : vector<2x24x32xf32>, vector<2x24x32xf32>, vector<2x24x32xf32>, vector<2x24x32xf32>, vector<2x24x32xf32>, vector<2x24x32xf32>, vector<2x24x32xf32>, vector<2x24x32xf32> -> vector<2x24x256xf32>
    %41 = vector.shape_cast %40 : vector<2x24x256xf32> to vector<48x256xf32>
    %c0_15 = arith.constant 0 : index
    %c0_16 = arith.constant 0 : index
    %42 = vector.load %arg8[%c0_15, %c0_16] : memref<3x96xf32, #tpu.memory_space<vmem>>, vector<1x96xf32>
    %c0_17 = arith.constant 0 : index
    %c0_18 = arith.constant 0 : index
    %c0_19 = arith.constant 0 : index
    %43 = vector.load %arg6[%c0_17, %c0_18, %c0_19] : memref<3x256x64xf32, #tpu.memory_space<vmem>>, vector<1x256x64xf32>
    %44 = vector.shape_cast %43 : vector<1x256x64xf32> to vector<256x64xf32>
    %cst_20 = arith.constant dense<0.000000e+00> : vector<48x64xf32>
    %45 = tpu.matmul %41, %44, %cst_20 {dimension_numbers = #tpu.dot_dimension_numbers<[1], [0], [0], [1], [0, 0, 1, 1], [], []>} : vector<48x256xf32>, vector<256x64xf32>, vector<48x64xf32> -> vector<48x64xf32>
    %46 = vector.extract_strided_slice %42 {offsets = [0, 0], sizes = [1, 64], strides = [1, 1]} : vector<1x96xf32> to vector<1x64xf32>
    %47 = vector.broadcast %46 : vector<1x64xf32> to vector<48x64xf32>
    %48 = arith.addf %45, %47 : vector<48x64xf32>
    %49 = vector.extract_strided_slice %48 {offsets = [0, 0], sizes = [48, 32], strides = [1, 1]} : vector<48x64xf32> to vector<48x32xf32>
    %50 = math.tanh %49 : vector<48x32xf32>
    %51 = vector.extract_strided_slice %48 {offsets = [0, 32], sizes = [48, 32], strides = [1, 1]} : vector<48x64xf32> to vector<48x32xf32>
    %52 = arith.negf %51 : vector<48x32xf32>
    %53 = math.exp %52 : vector<48x32xf32>
    %cst_21 = arith.constant 1.000000e+00 : f32
    %54 = vector.broadcast %cst_21 : f32 to vector<48x32xf32>
    %55 = arith.addf %54, %53 : vector<48x32xf32>
    %56 = arith.divf %54, %55 : vector<48x32xf32>
    %57 = arith.mulf %50, %56 : vector<48x32xf32>
    %c0_22 = arith.constant 0 : index
    %c0_23 = arith.constant 0 : index
    %c0_24 = arith.constant 0 : index
    %58 = vector.load %arg7[%c0_22, %c0_23, %c0_24] : memref<3x32x32xf32, #tpu.memory_space<vmem>>, vector<1x32x32xf32>
    %59 = vector.shape_cast %58 : vector<1x32x32xf32> to vector<32x32xf32>
    %cst_25 = arith.constant dense<0.000000e+00> : vector<48x32xf32>
    %60 = tpu.matmul %57, %59, %cst_25 {dimension_numbers = #tpu.dot_dimension_numbers<[1], [0], [0], [1], [0, 0, 1, 1], [], []>} : vector<48x32xf32>, vector<32x32xf32>, vector<48x32xf32> -> vector<48x32xf32>
    %61 = vector.extract_strided_slice %42 {offsets = [0, 64], sizes = [1, 32], strides = [1, 1]} : vector<1x96xf32> to vector<1x32xf32>
    %62 = vector.broadcast %61 : vector<1x32xf32> to vector<48x32xf32>
    %63 = arith.addf %60, %62 : vector<48x32xf32>
    %64 = arith.addf %63, %28 : vector<48x32xf32>
    %65 = vector.shape_cast %64 : vector<48x32xf32> to vector<2x24x32xf32>
    %66 = tpu.concatenate %29, %65 in 1 : vector<2x28x32xf32>, vector<2x24x32xf32> -> vector<2x52x32xf32>
    %67 = vector.extract_strided_slice %66 {offsets = [0, 14, 0], sizes = [2, 24, 32], strides = [1, 1, 1]} : vector<2x52x32xf32> to vector<2x24x32xf32>
    %68 = vector.extract_strided_slice %66 {offsets = [0, 16, 0], sizes = [2, 24, 32], strides = [1, 1, 1]} : vector<2x52x32xf32> to vector<2x24x32xf32>
    %69 = vector.extract_strided_slice %66 {offsets = [0, 18, 0], sizes = [2, 24, 32], strides = [1, 1, 1]} : vector<2x52x32xf32> to vector<2x24x32xf32>
    %70 = vector.extract_strided_slice %66 {offsets = [0, 20, 0], sizes = [2, 24, 32], strides = [1, 1, 1]} : vector<2x52x32xf32> to vector<2x24x32xf32>
    %71 = vector.extract_strided_slice %66 {offsets = [0, 22, 0], sizes = [2, 24, 32], strides = [1, 1, 1]} : vector<2x52x32xf32> to vector<2x24x32xf32>
    %72 = vector.extract_strided_slice %66 {offsets = [0, 24, 0], sizes = [2, 24, 32], strides = [1, 1, 1]} : vector<2x52x32xf32> to vector<2x24x32xf32>
    %73 = vector.extract_strided_slice %66 {offsets = [0, 26, 0], sizes = [2, 24, 32], strides = [1, 1, 1]} : vector<2x52x32xf32> to vector<2x24x32xf32>
    %74 = vector.extract_strided_slice %66 {offsets = [0, 28, 0], sizes = [2, 24, 32], strides = [1, 1, 1]} : vector<2x52x32xf32> to vector<2x24x32xf32>
    %75 = tpu.concatenate %67, %68, %69, %70, %71, %72, %73, %74 in 2 : vector<2x24x32xf32>, vector<2x24x32xf32>, vector<2x24x32xf32>, vector<2x24x32xf32>, vector<2x24x32xf32>, vector<2x24x32xf32>, vector<2x24x32xf32>, vector<2x24x32xf32> -> vector<2x24x256xf32>
    %76 = vector.shape_cast %75 : vector<2x24x256xf32> to vector<48x256xf32>
    %c1 = arith.constant 1 : index
    %c0_26 = arith.constant 0 : index
    %77 = vector.load %arg8[%c1, %c0_26] : memref<3x96xf32, #tpu.memory_space<vmem>>, vector<1x96xf32>
    %c1_27 = arith.constant 1 : index
    %c0_28 = arith.constant 0 : index
    %c0_29 = arith.constant 0 : index
    %78 = vector.load %arg6[%c1_27, %c0_28, %c0_29] : memref<3x256x64xf32, #tpu.memory_space<vmem>>, vector<1x256x64xf32>
    %79 = vector.shape_cast %78 : vector<1x256x64xf32> to vector<256x64xf32>
    %cst_30 = arith.constant dense<0.000000e+00> : vector<48x64xf32>
    %80 = tpu.matmul %76, %79, %cst_30 {dimension_numbers = #tpu.dot_dimension_numbers<[1], [0], [0], [1], [0, 0, 1, 1], [], []>} : vector<48x256xf32>, vector<256x64xf32>, vector<48x64xf32> -> vector<48x64xf32>
    %81 = vector.extract_strided_slice %77 {offsets = [0, 0], sizes = [1, 64], strides = [1, 1]} : vector<1x96xf32> to vector<1x64xf32>
    %82 = vector.broadcast %81 : vector<1x64xf32> to vector<48x64xf32>
    %83 = arith.addf %80, %82 : vector<48x64xf32>
    %84 = vector.extract_strided_slice %83 {offsets = [0, 0], sizes = [48, 32], strides = [1, 1]} : vector<48x64xf32> to vector<48x32xf32>
    %85 = math.tanh %84 : vector<48x32xf32>
    %86 = vector.extract_strided_slice %83 {offsets = [0, 32], sizes = [48, 32], strides = [1, 1]} : vector<48x64xf32> to vector<48x32xf32>
    %87 = arith.negf %86 : vector<48x32xf32>
    %88 = math.exp %87 : vector<48x32xf32>
    %cst_31 = arith.constant 1.000000e+00 : f32
    %89 = vector.broadcast %cst_31 : f32 to vector<48x32xf32>
    %90 = arith.addf %89, %88 : vector<48x32xf32>
    %91 = arith.divf %89, %90 : vector<48x32xf32>
    %92 = arith.mulf %85, %91 : vector<48x32xf32>
    %c1_32 = arith.constant 1 : index
    %c0_33 = arith.constant 0 : index
    %c0_34 = arith.constant 0 : index
    %93 = vector.load %arg7[%c1_32, %c0_33, %c0_34] : memref<3x32x32xf32, #tpu.memory_space<vmem>>, vector<1x32x32xf32>
    %94 = vector.shape_cast %93 : vector<1x32x32xf32> to vector<32x32xf32>
    %cst_35 = arith.constant dense<0.000000e+00> : vector<48x32xf32>
    %95 = tpu.matmul %92, %94, %cst_35 {dimension_numbers = #tpu.dot_dimension_numbers<[1], [0], [0], [1], [0, 0, 1, 1], [], []>} : vector<48x32xf32>, vector<32x32xf32>, vector<48x32xf32> -> vector<48x32xf32>
    %96 = vector.extract_strided_slice %77 {offsets = [0, 64], sizes = [1, 32], strides = [1, 1]} : vector<1x96xf32> to vector<1x32xf32>
    %97 = vector.broadcast %96 : vector<1x32xf32> to vector<48x32xf32>
    %98 = arith.addf %95, %97 : vector<48x32xf32>
    %99 = arith.addf %98, %64 : vector<48x32xf32>
    %100 = arith.addf %64, %99 : vector<48x32xf32>
    %101 = vector.shape_cast %99 : vector<48x32xf32> to vector<2x24x32xf32>
    %102 = tpu.concatenate %29, %101 in 1 : vector<2x28x32xf32>, vector<2x24x32xf32> -> vector<2x52x32xf32>
    %103 = vector.extract_strided_slice %102 {offsets = [0, 0, 0], sizes = [2, 24, 32], strides = [1, 1, 1]} : vector<2x52x32xf32> to vector<2x24x32xf32>
    %104 = vector.extract_strided_slice %102 {offsets = [0, 4, 0], sizes = [2, 24, 32], strides = [1, 1, 1]} : vector<2x52x32xf32> to vector<2x24x32xf32>
    %105 = vector.extract_strided_slice %102 {offsets = [0, 8, 0], sizes = [2, 24, 32], strides = [1, 1, 1]} : vector<2x52x32xf32> to vector<2x24x32xf32>
    %106 = vector.extract_strided_slice %102 {offsets = [0, 12, 0], sizes = [2, 24, 32], strides = [1, 1, 1]} : vector<2x52x32xf32> to vector<2x24x32xf32>
    %107 = vector.extract_strided_slice %102 {offsets = [0, 16, 0], sizes = [2, 24, 32], strides = [1, 1, 1]} : vector<2x52x32xf32> to vector<2x24x32xf32>
    %108 = vector.extract_strided_slice %102 {offsets = [0, 20, 0], sizes = [2, 24, 32], strides = [1, 1, 1]} : vector<2x52x32xf32> to vector<2x24x32xf32>
    %109 = vector.extract_strided_slice %102 {offsets = [0, 24, 0], sizes = [2, 24, 32], strides = [1, 1, 1]} : vector<2x52x32xf32> to vector<2x24x32xf32>
    %110 = vector.extract_strided_slice %102 {offsets = [0, 28, 0], sizes = [2, 24, 32], strides = [1, 1, 1]} : vector<2x52x32xf32> to vector<2x24x32xf32>
    %111 = tpu.concatenate %103, %104, %105, %106, %107, %108, %109, %110 in 2 : vector<2x24x32xf32>, vector<2x24x32xf32>, vector<2x24x32xf32>, vector<2x24x32xf32>, vector<2x24x32xf32>, vector<2x24x32xf32>, vector<2x24x32xf32>, vector<2x24x32xf32> -> vector<2x24x256xf32>
    %112 = vector.shape_cast %111 : vector<2x24x256xf32> to vector<48x256xf32>
    %c2 = arith.constant 2 : index
    %c0_36 = arith.constant 0 : index
    %113 = vector.load %arg8[%c2, %c0_36] : memref<3x96xf32, #tpu.memory_space<vmem>>, vector<1x96xf32>
    %c2_37 = arith.constant 2 : index
    %c0_38 = arith.constant 0 : index
    %c0_39 = arith.constant 0 : index
    %114 = vector.load %arg6[%c2_37, %c0_38, %c0_39] : memref<3x256x64xf32, #tpu.memory_space<vmem>>, vector<1x256x64xf32>
    %115 = vector.shape_cast %114 : vector<1x256x64xf32> to vector<256x64xf32>
    %cst_40 = arith.constant dense<0.000000e+00> : vector<48x64xf32>
    %116 = tpu.matmul %112, %115, %cst_40 {dimension_numbers = #tpu.dot_dimension_numbers<[1], [0], [0], [1], [0, 0, 1, 1], [], []>} : vector<48x256xf32>, vector<256x64xf32>, vector<48x64xf32> -> vector<48x64xf32>
    %117 = vector.extract_strided_slice %113 {offsets = [0, 0], sizes = [1, 64], strides = [1, 1]} : vector<1x96xf32> to vector<1x64xf32>
    %118 = vector.broadcast %117 : vector<1x64xf32> to vector<48x64xf32>
    %119 = arith.addf %116, %118 : vector<48x64xf32>
    %120 = vector.extract_strided_slice %119 {offsets = [0, 0], sizes = [48, 32], strides = [1, 1]} : vector<48x64xf32> to vector<48x32xf32>
    %121 = math.tanh %120 : vector<48x32xf32>
    %122 = vector.extract_strided_slice %119 {offsets = [0, 32], sizes = [48, 32], strides = [1, 1]} : vector<48x64xf32> to vector<48x32xf32>
    %123 = arith.negf %122 : vector<48x32xf32>
    %124 = math.exp %123 : vector<48x32xf32>
    %cst_41 = arith.constant 1.000000e+00 : f32
    %125 = vector.broadcast %cst_41 : f32 to vector<48x32xf32>
    %126 = arith.addf %125, %124 : vector<48x32xf32>
    %127 = arith.divf %125, %126 : vector<48x32xf32>
    %128 = arith.mulf %121, %127 : vector<48x32xf32>
    %c2_42 = arith.constant 2 : index
    %c0_43 = arith.constant 0 : index
    %c0_44 = arith.constant 0 : index
    %129 = vector.load %arg7[%c2_42, %c0_43, %c0_44] : memref<3x32x32xf32, #tpu.memory_space<vmem>>, vector<1x32x32xf32>
    %130 = vector.shape_cast %129 : vector<1x32x32xf32> to vector<32x32xf32>
    %cst_45 = arith.constant dense<0.000000e+00> : vector<48x32xf32>
    %131 = tpu.matmul %128, %130, %cst_45 {dimension_numbers = #tpu.dot_dimension_numbers<[1], [0], [0], [1], [0, 0, 1, 1], [], []>} : vector<48x32xf32>, vector<32x32xf32>, vector<48x32xf32> -> vector<48x32xf32>
    %132 = vector.extract_strided_slice %113 {offsets = [0, 64], sizes = [1, 32], strides = [1, 1]} : vector<1x96xf32> to vector<1x32xf32>
    %133 = vector.broadcast %132 : vector<1x32xf32> to vector<48x32xf32>
    %134 = arith.addf %131, %133 : vector<48x32xf32>
    %135 = arith.addf %134, %99 : vector<48x32xf32>
    %136 = arith.addf %100, %135 : vector<48x32xf32>
    %137 = vector.shape_cast %136 : vector<48x32xf32> to vector<2x24x32xf32>
    %138 = tpu.iota {dimensions = array<i32: 1>} : vector<2x24x32xi32>
    %c18_i32 = arith.constant 18 : i32
    %139 = vector.broadcast %c18_i32 : i32 to vector<2x24x32xi32>
    %140 = arith.cmpi slt, %138, %139 : vector<2x24x32xi32>
    %cst_46 = arith.constant 0.000000e+00 : f32
    %141 = vector.broadcast %cst_46 : f32 to vector<2x24x32xf32>
    %142 = arith.select %140, %137, %141 : vector<2x24x32xi1>, vector<2x24x32xf32>
    %cst_47 = arith.constant dense<0.000000e+00> : vector<2x32xf32>
    %143 = vector.multi_reduction <add>, %142, %cst_47 [1] : vector<2x24x32xf32> to vector<2x32xf32>
    %cst_48 = arith.constant 0.055555556 : f32
    %144 = vector.broadcast %cst_48 : f32 to vector<2x32xf32>
    %145 = arith.mulf %143, %144 : vector<2x32xf32>
    %c0_49 = arith.constant 0 : index
    %c0_50 = arith.constant 0 : index
    %146 = vector.load %arg9[%c0_49, %c0_50] : memref<32x2xf32, #tpu.memory_space<vmem>>, vector<32x2xf32>
    %cst_51 = arith.constant dense<0.000000e+00> : vector<2x2xf32>
    %147 = tpu.matmul %145, %146, %cst_51 {dimension_numbers = #tpu.dot_dimension_numbers<[1], [0], [0], [1], [0, 0, 1, 1], [], []>} : vector<2x32xf32>, vector<32x2xf32>, vector<2x2xf32> -> vector<2x2xf32>
    %c0_52 = arith.constant 0 : index
    %c0_53 = arith.constant 0 : index
    %148 = vector.load %arg10[%c0_52, %c0_53] : memref<1x2xf32, #tpu.memory_space<vmem>>, vector<1x2xf32>
    %149 = vector.broadcast %148 : vector<1x2xf32> to vector<2x2xf32>
    %150 = arith.addf %147, %149 : vector<2x2xf32>
    %c0_54 = arith.constant 0 : index
    %c0_55 = arith.constant 0 : index
    %151 = vector.load %arg11[%c0_54, %c0_55] : memref<2x2xf32, #tpu.memory_space<vmem>>, vector<2x2xf32>
    tpu.vector_store %arg11[%c0_54, %c0_55], %150 {strides = array<i32>} : memref<2x2xf32, #tpu.memory_space<vmem>>, vector<2x2xf32>,
    return
  }
  func.func @transform_0(%arg0: i32) -> (i32, i32, i32) {
    %c0_i32 = arith.constant 0 : i32
    %c0_i32_0 = arith.constant 0 : i32
    %c0_i32_1 = arith.constant 0 : i32
    return %arg0, %c0_i32, %c0_i32_0 : i32, i32, i32
  }
  func.func @transform_1(%arg0: i32) -> (i32, i32) {
    %c0_i32 = arith.constant 0 : i32
    %c0_i32_0 = arith.constant 0 : i32
    %c0_i32_1 = arith.constant 0 : i32
    return %c0_i32, %c0_i32_0 : i32, i32
  }
  func.func @transform_2(%arg0: i32) -> (i32, i32) {
    %c0_i32 = arith.constant 0 : i32
    %c0_i32_0 = arith.constant 0 : i32
    %c0_i32_1 = arith.constant 0 : i32
    return %c0_i32, %c0_i32_0 : i32, i32
  }
  func.func @transform_3(%arg0: i32) -> (i32, i32) {
    %c0_i32 = arith.constant 0 : i32
    %c0_i32_0 = arith.constant 0 : i32
    %c0_i32_1 = arith.constant 0 : i32
    return %c0_i32, %c0_i32_0 : i32, i32
  }
  func.func @transform_4(%arg0: i32) -> (i32, i32) {
    %c0_i32 = arith.constant 0 : i32
    %c0_i32_0 = arith.constant 0 : i32
    %c0_i32_1 = arith.constant 0 : i32
    return %c0_i32, %c0_i32_0 : i32, i32
  }
  func.func @transform_5(%arg0: i32) -> (i32, i32, i32) {
    %c0_i32 = arith.constant 0 : i32
    %c0_i32_0 = arith.constant 0 : i32
    %c0_i32_1 = arith.constant 0 : i32
    %c0_i32_2 = arith.constant 0 : i32
    return %c0_i32, %c0_i32_0, %c0_i32_1 : i32, i32, i32
  }
  func.func @transform_6(%arg0: i32) -> (i32, i32, i32) {
    %c0_i32 = arith.constant 0 : i32
    %c0_i32_0 = arith.constant 0 : i32
    %c0_i32_1 = arith.constant 0 : i32
    %c0_i32_2 = arith.constant 0 : i32
    return %c0_i32, %c0_i32_0, %c0_i32_1 : i32, i32, i32
  }
  func.func @transform_7(%arg0: i32) -> (i32, i32) {
    %c0_i32 = arith.constant 0 : i32
    %c0_i32_0 = arith.constant 0 : i32
    %c0_i32_1 = arith.constant 0 : i32
    return %c0_i32, %c0_i32_0 : i32, i32
  }
  func.func @transform_8(%arg0: i32) -> (i32, i32) {
    %c0_i32 = arith.constant 0 : i32
    %c0_i32_0 = arith.constant 0 : i32
    %c0_i32_1 = arith.constant 0 : i32
    return %c0_i32, %c0_i32_0 : i32, i32
  }
  func.func @transform_9(%arg0: i32) -> (i32, i32) {
    %c0_i32 = arith.constant 0 : i32
    %c0_i32_0 = arith.constant 0 : i32
    %c0_i32_1 = arith.constant 0 : i32
    return %c0_i32, %c0_i32_0 : i32, i32
  }
  func.func @transform_10(%arg0: i32) -> (i32, i32) {
    %c0_i32 = arith.constant 0 : i32
    %c0_i32_0 = arith.constant 0 : i32
    return %arg0, %c0_i32 : i32, i32
  }
}

</mosaic_0001>

<llo_original>
// kernel: tpu_custom_call.1
$region0: #{tpu_custom_call.1}
  #allocation0 [shape = 'u32[]', space=smem, size = 0x4, offset = 0x4, fixed_abs, tag = 'smem constant byte address 0x4 - core index']
  #allocation1 [shape = 'u32[144,128]{1,0:T(1,128)}', space=vmem, size = 0x12000, scoped, tag = 'internal scratch']
  %s0 = inlined_call_operand.vmem [shape: f32[2,11,24], index: 0, kind: input, shape index: {}]
  %s1 = inlined_call_operand.vmem [shape: f32[11,32], index: 1, kind: input, shape index: {}]
  %s2 = inlined_call_operand.vmem [shape: f32[1,32], index: 2, kind: input, shape index: {}]
  %s3 = inlined_call_operand.vmem [shape: f32[256,32], index: 3, kind: input, shape index: {}]
  %s4 = inlined_call_operand.vmem [shape: f32[1,32], index: 4, kind: input, shape index: {}]
  %s5 = inlined_call_operand.vmem [shape: f32[3,256,64], index: 5, kind: input, shape index: {}]
  %s6 = inlined_call_operand.vmem [shape: f32[3,32,32], index: 6, kind: input, shape index: {}]
  %s7 = inlined_call_operand.vmem [shape: f32[3,96], index: 7, kind: input, shape index: {}]
  %s8 = inlined_call_operand.vmem [shape: f32[32,2], index: 8, kind: input, shape index: {}]
  %s9 = inlined_call_operand.vmem [shape: f32[1,2], index: 9, kind: input, shape index: {}]
  %s10 = inlined_call_operand.hbm [shape: f32[2,2], index: 10, kind: output, shape index: {}]
  %s11 = sld [smem:[#allocation0]]
  $region50: #{tpu_custom_call.1} parent=0
    _
  %s13 = ssub.s32 1, %s11
  %s14 = scalar_select 0, %s13, %s11
  $region1: #{tpu_custom_call.1} parent=0
    #allocation2 [shape = 'u8[1024]{0}', space=vmem, size = 0x400, scoped, tag = 'output window, operand 0, single buffered']
    #allocation3 [shape = 's32[1]{0}', space=sflag, size = 0x4, scoped, tag = 'scoped memory for tpu_custom_call.1']
    %15 = vsyncpa [#allocation3], 0
    // Predicated region
    $region2: #{tpu_custom_call.1} parent=1 // pred_check
      _
    $region3: #{tpu_custom_call.1} parent=1 // pred_check_branch
      %17 = sbr.rel (0) target = $region5
    $region4: #{tpu_custom_call.1} parent=1 // pred_region
      _
    $region5: #{tpu_custom_call.1} parent=1 // pred_fallthru
      _
    // Predicated region
    $region6: #{tpu_custom_call.1} parent=1 // pred_check
      _
    $region7: #{tpu_custom_call.1} parent=1 // pred_check_branch
      %19 = sbr.rel (0) target = $region9
    $region8: #{tpu_custom_call.1} parent=1 // pred_region
      _
    $region9: #{tpu_custom_call.1} parent=1 // pred_fallthru
      _
    // Predicated region
    $region10: #{tpu_custom_call.1} parent=1 // pred_check
      _
    $region11: #{tpu_custom_call.1} parent=1 // pred_check_branch
      %21 = sbr.rel (0) target = $region13
    $region12: #{tpu_custom_call.1} parent=1 // pred_region
      _
    $region13: #{tpu_custom_call.1} parent=1 // pred_fallthru
      _
    // Predicated region
    $region14: #{tpu_custom_call.1} parent=1 // pred_check
      _
    $region15: #{tpu_custom_call.1} parent=1 // pred_check_branch
      %23 = sbr.rel (0) target = $region17
    $region16: #{tpu_custom_call.1} parent=1 // pred_region
      _
    $region17: #{tpu_custom_call.1} parent=1 // pred_fallthru
      _
    // Predicated region
    $region18: #{tpu_custom_call.1} parent=1 // pred_check
      _
    $region19: #{tpu_custom_call.1} parent=1 // pred_check_branch
      %25 = sbr.rel (0) target = $region21
    $region20: #{tpu_custom_call.1} parent=1 // pred_region
      _
    $region21: #{tpu_custom_call.1} parent=1 // pred_fallthru
      _
    // Predicated region
    $region22: #{tpu_custom_call.1} parent=1 // pred_check
      _
    $region23: #{tpu_custom_call.1} parent=1 // pred_check_branch
      %27 = sbr.rel (0) target = $region25
    $region24: #{tpu_custom_call.1} parent=1 // pred_region
      _
    $region25: #{tpu_custom_call.1} parent=1 // pred_fallthru
      _
    // Predicated region
    $region26: #{tpu_custom_call.1} parent=1 // pred_check
      _
    $region27: #{tpu_custom_call.1} parent=1 // pred_check_branch
      %29 = sbr.rel (0) target = $region29
    $region28: #{tpu_custom_call.1} parent=1 // pred_region
      _
    $region29: #{tpu_custom_call.1} parent=1 // pred_fallthru
      _
    // Predicated region
    $region30: #{tpu_custom_call.1} parent=1 // pred_check
      _
    $region31: #{tpu_custom_call.1} parent=1 // pred_check_branch
      %31 = sbr.rel (0) target = $region33
    $region32: #{tpu_custom_call.1} parent=1 // pred_region
      _
    $region33: #{tpu_custom_call.1} parent=1 // pred_fallthru
      _
    // Predicated region
    $region34: #{tpu_custom_call.1} parent=1 // pred_check
      _
    $region35: #{tpu_custom_call.1} parent=1 // pred_check_branch
      %33 = sbr.rel (0) target = $region37
    $region36: #{tpu_custom_call.1} parent=1 // pred_region
      _
    $region37: #{tpu_custom_call.1} parent=1 // pred_fallthru
      _
    // Predicated region
    $region38: #{tpu_custom_call.1} parent=1 // pred_check
      _
    $region39: #{tpu_custom_call.1} parent=1 // pred_check_branch
      %35 = sbr.rel (0) target = $region41
    $region40: #{tpu_custom_call.1} parent=1 // pred_region
      _
    $region41: #{tpu_custom_call.1} parent=1 // pred_fallthru
      _
    %v36 = vld [vmem:[%s0] sm:$0xff]
    %v37 = vld [vmem:[%s0 + $0x8] sm:$0x7]
    %v38 = vld [vmem:[%s0 + $0x10] sm:$0xff]
    %v39 = vld [vmem:[%s0 + $0x18] sm:$0x7]
    %40 = vxpose.xlu0.b32.start [1/16] %v36, 128
    %41 = vxpose.xlu0.b32.cont [2/16] %v37, 128
    %42 = vxpose.xlu0.b32.cont [3/16] 0.0, 128
    %43 = vxpose.xlu0.b32.cont [4/16] 0.0, 128
    %44 = vxpose.xlu0.b32.cont [5/16] 0.0, 128
    %45 = vxpose.xlu0.b32.cont [6/16] 0.0, 128
    %46 = vxpose.xlu0.b32.cont [7/16] 0.0, 128
    %47 = vxpose.xlu0.b32.cont [8/16] 0.0, 128
    %48 = vxpose.xlu0.b32.cont [9/16] 0.0, 128
    %49 = vxpose.xlu0.b32.cont [10/16] 0.0, 128
    %50 = vxpose.xlu0.b32.cont [11/16] 0.0, 128
    %51 = vxpose.xlu0.b32.cont [12/16] 0.0, 128
    %52 = vxpose.xlu0.b32.cont [13/16] 0.0, 128
    %53 = vxpose.xlu0.b32.cont [14/16] 0.0, 128
    %54 = vxpose.xlu0.b32.cont [15/16] 0.0, 128
    %55 = vxpose.xlu0.b32.end [16/16] 0.0, 128
    %v56 = vpop.trf.xlu0
    %v57 = vpop.trf.xlu0
    %v58 = vpop.trf.xlu0
    %v59 = vpop.trf.xlu0
    %v60 = vpop.trf.xlu0
    %v61 = vpop.trf.xlu0
    %v62 = vpop.trf.xlu0
    %v63 = vpop.trf.xlu0
    %v64 = vpop.trf.xlu0
    %v65 = vpop.trf.xlu0
    %v66 = vpop.trf.xlu0
    %v67 = vpop.trf.xlu0
    %v68 = vpop.trf.xlu0
    %v69 = vpop.trf.xlu0
    %v70 = vpop.trf.xlu0
    %v71 = vpop.trf.xlu0
    %72 = vxpose.xlu0.b32.start [1/16] %v38, 128
    %73 = vxpose.xlu0.b32.cont [2/16] %v39, 128
    %74 = vxpose.xlu0.b32.cont [3/16] 0.0, 128
    %75 = vxpose.xlu0.b32.cont [4/16] 0.0, 128
    %76 = vxpose.xlu0.b32.cont [5/16] 0.0, 128
    %77 = vxpose.xlu0.b32.cont [6/16] 0.0, 128
    %78 = vxpose.xlu0.b32.cont [7/16] 0.0, 128
    %79 = vxpose.xlu0.b32.cont [8/16] 0.0, 128
    %80 = vxpose.xlu0.b32.cont [9/16] 0.0, 128
    %81 = vxpose.xlu0.b32.cont [10/16] 0.0, 128
    %82 = vxpose.xlu0.b32.cont [11/16] 0.0, 128
    %83 = vxpose.xlu0.b32.cont [12/16] 0.0, 128
    %84 = vxpose.xlu0.b32.cont [13/16] 0.0, 128
    %85 = vxpose.xlu0.b32.cont [14/16] 0.0, 128
    %86 = vxpose.xlu0.b32.cont [15/16] 0.0, 128
    %87 = vxpose.xlu0.b32.end [16/16] 0.0, 128
    %v88 = vpop.trf.xlu0
    %v89 = vpop.trf.xlu0
    %v90 = vpop.trf.xlu0
    %v91 = vpop.trf.xlu0
    %v92 = vpop.trf.xlu0
    %v93 = vpop.trf.xlu0
    %v94 = vpop.trf.xlu0
    %v95 = vpop.trf.xlu0
    %v96 = vpop.trf.xlu0
    %v97 = vpop.trf.xlu0
    %v98 = vpop.trf.xlu0
    %v99 = vpop.trf.xlu0
    %v100 = vpop.trf.xlu0
    %v101 = vpop.trf.xlu0
    %v102 = vpop.trf.xlu0
    %v103 = vpop.trf.xlu0
    %v104 = vld [vmem:[%s1] sm:$0xff]
    %v105 = vld [vmem:[%s1 + $0x8] sm:$0x7]
    %v106 = vld [vmem:[%s2] sm:$0x1]
    %v108 = vlaneseq
    %v109 = vshrl.u32 %v108, 7
    %v110 = vsub.s32 0, %v109
    %v111 = vrot.slane %v106, %v110
    %vm113 = vcmask 89088
    %v115 = vsel %vm113, %v56, 0
    %v118 = vsel %vm113, %v57, 0
    %v121 = vsel %vm113, %v58, 0
    %v124 = vsel %vm113, %v88, 0
    %v127 = vsel %vm113, %v89, 0
    %v130 = vsel %vm113, %v90, 0
    %vm132 = vcmask 1042432
    %v134 = vsel %vm132, %v105, 0
    %136 = vmatprep.subr.mxu0 0.0
    %137 = vmatpush1.msra.mxu0 %v104
    %138 = vmatprep.subr.mxu0 0.0
    %139 = vmatpush1.msra.mxu0 %v134
    %140 = vmatprep.subr.mxu0 0.0
    %141 = vmatpush1.msra.mxu0 0.0
    %142 = vmatprep.subr.mxu0 0.0
    %143 = vmatpush1.msra.mxu0 0.0
    %144 = vmatprep.subr.mxu0 0.0
    %145 = vmatpush1.msra.mxu0 0.0
    %146 = vmatprep.subr.mxu0 0.0
    %147 = vmatpush1.msra.mxu0 0.0
    %148 = vmatprep.subr.mxu0 0.0
    %149 = vmatpush1.msra.mxu0 0.0
    %150 = vmatprep.subr.mxu0 0.0
    %151 = vmatpush1.msra.mxu0 0.0
    %152 = vmatprep.subr.mxu0 0.0
    %153 = vmatpush1.msra.mxu0 0.0
    %154 = vmatprep.subr.mxu0 0.0
    %155 = vmatpush1.msra.mxu0 0.0
    %156 = vmatprep.subr.mxu0 0.0
    %157 = vmatpush1.msra.mxu0 0.0
    %158 = vmatprep.subr.mxu0 0.0
    %159 = vmatpush1.msra.mxu0 0.0
    %160 = vmatprep.subr.mxu0 0.0
    %161 = vmatpush1.msra.mxu0 0.0
    %162 = vmatprep.subr.mxu0 0.0
    %163 = vmatpush1.msra.mxu0 0.0
    %164 = vmatprep.subr.mxu0 0.0
    %165 = vmatpush1.msra.mxu0 0.0
    %166 = vmatprep.subr.mxu0 0.0
    %167 = vmatpush1.msra.mxu0 0.0
    %168 = vmatprep.subr.mxu0 0.0
    %169 = vmatpush1.msra.mxu0 0.0
    %170 = vmatprep.subr.mxu0 0.0
    %171 = vmatpush1.msra.mxu0 0.0
    %172 = vmatprep.subr.mxu0 0.0
    %173 = vmatpush1.msra.mxu0 0.0
    %174 = vmatprep.subr.mxu0 0.0
    %175 = vmatpush1.msra.mxu0 0.0
    %176 = vmatprep.subr.mxu0 0.0
    %177 = vmatpush1.msra.mxu0 0.0
    %178 = vmatprep.subr.mxu0 0.0
    %179 = vmatpush1.msra.mxu0 0.0
    %180 = vmatprep.subr.mxu0 0.0
    %181 = vmatpush1.msra.mxu0 0.0
    %182 = vmatprep.subr.mxu0 0.0
    %183 = vmatpush1.msra.mxu0 0.0
    %184 = vmatprep.subr.mxu0 0.0
    %185 = vmatpush1.msra.mxu0 0.0
    %186 = vmatprep.subr.mxu0 0.0
    %187 = vmatpush1.msra.mxu0 0.0
    %188 = vmatprep.subr.mxu0 0.0
    %189 = vmatpush1.msra.mxu0 0.0
    %190 = vmatprep.subr.mxu0 0.0
    %191 = vmatpush1.msra.mxu0 0.0
    %192 = vmatprep.subr.mxu0 0.0
    %193 = vmatpush1.msra.mxu0 0.0
    %194 = vmatprep.subr.mxu0 0.0
    %195 = vmatpush1.msra.mxu0 0.0
    %196 = vmatprep.subr.mxu0 0.0
    %197 = vmatpush1.msra.mxu0 0.0
    %198 = vmatprep.subr.mxu0 0.0
    %199 = vmatpush1.msra.mxu0 0.0
    %200 = vmatprep.mubr.f32.mxu0 0.0
    %201 = vmatmul.mubr.f32.gmra.mrb[0].mxu0 %v115
    %v202 = vpop.f32.mrb[0].mxu0
    %v203 = vadd.f32 %v111, %v202
    %v204 = vpop.f32.mrb[0].mxu0
    %205 = vmatprep.mubr.f32.mxu0 0.0
    %206 = vmatmul.mubr.f32.gmra.mrb[0].mxu0 %v118
    %v207 = vpop.f32.mrb[0].mxu0
    %v208 = vadd.f32 %v111, %v207
    %v209 = vpop.f32.mrb[0].mxu0
    %210 = vmatprep.mubr.f32.mxu0 0.0
    %211 = vmatmul.mubr.f32.gmra.mrb[0].mxu0 %v121
    %v212 = vpop.f32.mrb[0].mxu0
    %v213 = vadd.f32 %v111, %v212
    %v214 = vpop.f32.mrb[0].mxu0
    %215 = vmatprep.mubr.f32.mxu0 0.0
    %216 = vmatmul.mubr.f32.gmra.mrb[0].mxu0 %v124
    %v217 = vpop.f32.mrb[0].mxu0
    %v218 = vadd.f32 %v111, %v217
    %v219 = vpop.f32.mrb[0].mxu0
    %220 = vmatprep.mubr.f32.mxu0 0.0
    %221 = vmatmul.mubr.f32.gmra.mrb[0].mxu0 %v127
    %v222 = vpop.f32.mrb[0].mxu0
    %v223 = vadd.f32 %v111, %v222
    %v224 = vpop.f32.mrb[0].mxu0
    %225 = vmatprep.mubr.f32.mxu0 0.0
    %226 = vmatmul.mubr.f32.gmra.mrb[0].mxu0 %v130
    %v227 = vpop.f32.mrb[0].mxu0
    %v228 = vadd.f32 %v111, %v227
    %v229 = vpop.f32.mrb[0].mxu0
    %230 = vdwg.mxu0
    %vm237 = vcmask 1040384
    %v238 = vrot.slane %v203, 7
    %v239 = vrot.slane %v208, 7
    %v240 = vsel %vm237, %v238, %v239
    %v241 = vrot.slane %v213, 7
    %v242 = vsel %vm237, %v239, %v241
    %v243 = vrot.slane %v218, 7
    %v244 = vrot.slane %v223, 7
    %v245 = vsel %vm237, %v243, %v244
    %v246 = vrot.slane %v228, 7
    %v247 = vsel %vm237, %v244, %v246
    %v256 = vsel %vm237, 0.0, %v238
    %v257 = vsel %vm237, 0.0, %v243
    %v258 = vsel %vm237, %v241, 0.0
    %v259 = vsel %vm237, %v246, 0.0
    %vm264 = vcmask 1046528
    %v265 = vrot.slane %v256, 1
    %v266 = vrot.slane %v240, 1
    %v267 = vsel %vm264, %v265, %v266
    %v268 = vrot.slane %v242, 1
    %v269 = vsel %vm264, %v266, %v268
    %v270 = vrot.slane %v258, 1
    %v271 = vsel %vm264, %v268, %v270
    %v272 = vrot.slane %v257, 1
    %v273 = vrot.slane %v245, 1
    %v274 = vsel %vm264, %v272, %v273
    %v275 = vrot.slane %v247, 1
    %v276 = vsel %vm264, %v273, %v275
    %v277 = vrot.slane %v259, 1
    %v278 = vsel %vm264, %v275, %v277
    %279 = vrot.lane.b32.xlu0 %v267, 32
    %v280 = vpop.permute.xlu0 %279
    %281 = vrot.lane.b32.xlu0 %v269, 32
    %v282 = vpop.permute.xlu0 %281
    %283 = vrot.lane.b32.xlu0 %v271, 32
    %v284 = vpop.permute.xlu0 %283
    %285 = vrot.lane.b32.xlu0 %v274, 32
    %v286 = vpop.permute.xlu0 %285
    %287 = vrot.lane.b32.xlu0 %v276, 32
    %v288 = vpop.permute.xlu0 %287
    %289 = vrot.lane.b32.xlu0 %v278, 32
    %v290 = vpop.permute.xlu0 %289
    %vm297 = vcmask 1045504
    %v298 = vrot.slane %v256, 2
    %v299 = vrot.slane %v240, 2
    %v300 = vsel %vm297, %v298, %v299
    %v301 = vrot.slane %v242, 2
    %v302 = vsel %vm297, %v299, %v301
    %v303 = vrot.slane %v258, 2
    %v304 = vsel %vm297, %v301, %v303
    %v305 = vrot.slane %v257, 2
    %v306 = vrot.slane %v245, 2
    %v307 = vsel %vm297, %v305, %v306
    %v308 = vrot.slane %v247, 2
    %v309 = vsel %vm297, %v306, %v308
    %v310 = vrot.slane %v259, 2
    %v311 = vsel %vm297, %v308, %v310
    %312 = vrot.lane.b32.xlu0 %v300, 64
    %v313 = vpop.permute.xlu0 %312
    %314 = vrot.lane.b32.xlu0 %v302, 64
    %v315 = vpop.permute.xlu0 %314
    %316 = vrot.lane.b32.xlu0 %v304, 64
    %v317 = vpop.permute.xlu0 %316
    %318 = vrot.lane.b32.xlu0 %v307, 64
    %v319 = vpop.permute.xlu0 %318
    %320 = vrot.lane.b32.xlu0 %v309, 64
    %v321 = vpop.permute.xlu0 %320
    %322 = vrot.lane.b32.xlu0 %v311, 64
    %v323 = vpop.permute.xlu0 %322
    %vm330 = vcmask 1044480
    %v331 = vrot.slane %v256, 3
    %v332 = vrot.slane %v240, 3
    %v333 = vsel %vm330, %v331, %v332
    %v334 = vrot.slane %v242, 3
    %v335 = vsel %vm330, %v332, %v334
    %v336 = vrot.slane %v258, 3
    %v337 = vsel %vm330, %v334, %v336
    %v338 = vrot.slane %v257, 3
    %v339 = vrot.slane %v245, 3
    %v340 = vsel %vm330, %v338, %v339
    %v341 = vrot.slane %v247, 3
    %v342 = vsel %vm330, %v339, %v341
    %v343 = vrot.slane %v259, 3
    %v344 = vsel %vm330, %v341, %v343
    %345 = vrot.lane.b32.xlu0 %v333, 96
    %v346 = vpop.permute.xlu0 %345
    %347 = vrot.lane.b32.xlu0 %v335, 96
    %v348 = vpop.permute.xlu0 %347
    %349 = vrot.lane.b32.xlu0 %v337, 96
    %v350 = vpop.permute.xlu0 %349
    %351 = vrot.lane.b32.xlu0 %v340, 96
    %v352 = vpop.permute.xlu0 %351
    %353 = vrot.lane.b32.xlu0 %v342, 96
    %v354 = vpop.permute.xlu0 %353
    %355 = vrot.lane.b32.xlu0 %v344, 96
    %v356 = vpop.permute.xlu0 %355
    %vm363 = vcmask 1043456
    %v364 = vrot.slane %v256, 4
    %v365 = vrot.slane %v240, 4
    %v366 = vsel %vm363, %v364, %v365
    %v367 = vrot.slane %v242, 4
    %v368 = vsel %vm363, %v365, %v367
    %v369 = vrot.slane %v258, 4
    %v370 = vsel %vm363, %v367, %v369
    %v371 = vrot.slane %v257, 4
    %v372 = vrot.slane %v245, 4
    %v373 = vsel %vm363, %v371, %v372
    %v374 = vrot.slane %v247, 4
    %v375 = vsel %vm363, %v372, %v374
    %v376 = vrot.slane %v259, 4
    %v377 = vsel %vm363, %v374, %v376
    %v384 = vrot.slane %v256, 5
    %v385 = vrot.slane %v240, 5
    %v386 = vsel %vm132, %v384, %v385
    %v387 = vrot.slane %v242, 5
    %v388 = vsel %vm132, %v385, %v387
    %v389 = vrot.slane %v258, 5
    %v390 = vsel %vm132, %v387, %v389
    %v391 = vrot.slane %v257, 5
    %v392 = vrot.slane %v245, 5
    %v393 = vsel %vm132, %v391, %v392
    %v394 = vrot.slane %v247, 5
    %v395 = vsel %vm132, %v392, %v394
    %v396 = vrot.slane %v259, 5
    %v397 = vsel %vm132, %v394, %v396
    %398 = vrot.lane.b32.xlu0 %v386, 32
    %v399 = vpop.permute.xlu0 %398
    %400 = vrot.lane.b32.xlu0 %v388, 32
    %v401 = vpop.permute.xlu0 %400
    %402 = vrot.lane.b32.xlu0 %v390, 32
    %v403 = vpop.permute.xlu0 %402
    %404 = vrot.lane.b32.xlu0 %v393, 32
    %v405 = vpop.permute.xlu0 %404
    %406 = vrot.lane.b32.xlu0 %v395, 32
    %v407 = vpop.permute.xlu0 %406
    %408 = vrot.lane.b32.xlu0 %v397, 32
    %v409 = vpop.permute.xlu0 %408
    %vm416 = vcmask 1041408
    %v417 = vrot.slane %v256, 6
    %v418 = vrot.slane %v240, 6
    %v419 = vsel %vm416, %v417, %v418
    %v420 = vrot.slane %v242, 6
    %v421 = vsel %vm416, %v418, %v420
    %v422 = vrot.slane %v258, 6
    %v423 = vsel %vm416, %v420, %v422
    %v424 = vrot.slane %v257, 6
    %v425 = vrot.slane %v245, 6
    %v426 = vsel %vm416, %v424, %v425
    %v427 = vrot.slane %v247, 6
    %v428 = vsel %vm416, %v425, %v427
    %v429 = vrot.slane %v259, 6
    %v430 = vsel %vm416, %v427, %v429
    %431 = vrot.lane.b32.xlu0 %v419, 64
    %v432 = vpop.permute.xlu0 %431
    %433 = vrot.lane.b32.xlu0 %v421, 64
    %v434 = vpop.permute.xlu0 %433
    %435 = vrot.lane.b32.xlu0 %v423, 64
    %v436 = vpop.permute.xlu0 %435
    %437 = vrot.lane.b32.xlu0 %v426, 64
    %v438 = vpop.permute.xlu0 %437
    %439 = vrot.lane.b32.xlu0 %v428, 64
    %v440 = vpop.permute.xlu0 %439
    %441 = vrot.lane.b32.xlu0 %v430, 64
    %v442 = vpop.permute.xlu0 %441
    %v449 = vrot.slane %v256, 7
    %v450 = vrot.slane %v240, 7
    %v451 = vsel %vm237, %v449, %v450
    %v452 = vrot.slane %v242, 7
    %v453 = vsel %vm237, %v450, %v452
    %v454 = vrot.slane %v258, 7
    %v455 = vsel %vm237, %v452, %v454
    %v456 = vrot.slane %v257, 7
    %v457 = vrot.slane %v245, 7
    %v458 = vsel %vm237, %v456, %v457
    %v459 = vrot.slane %v247, 7
    %v460 = vsel %vm237, %v457, %v459
    %v461 = vrot.slane %v259, 7
    %v462 = vsel %vm237, %v459, %v461
    %463 = vrot.lane.b32.xlu0 %v451, 96
    %v464 = vpop.permute.xlu0 %463
    %465 = vrot.lane.b32.xlu0 %v453, 96
    %v466 = vpop.permute.xlu0 %465
    %467 = vrot.lane.b32.xlu0 %v455, 96
    %v468 = vpop.permute.xlu0 %467
    %469 = vrot.lane.b32.xlu0 %v458, 96
    %v470 = vpop.permute.xlu0 %469
    %471 = vrot.lane.b32.xlu0 %v460, 96
    %v472 = vpop.permute.xlu0 %471
    %473 = vrot.lane.b32.xlu0 %v462, 96
    %v474 = vpop.permute.xlu0 %473
    %vm481 = vcmask 261120
    %v482 = vsel %vm481, %v256, %v280
    %v483 = vsel %vm481, %v240, %v282
    %v484 = vsel %vm481, %v242, %v284
    %v485 = vsel %vm481, %v257, %v286
    %v486 = vsel %vm481, %v245, %v288
    %v487 = vsel %vm481, %v247, %v290
    %vm488 = vcmask 523264
    %v489 = vsel %vm488, %v482, %v313
    %v490 = vsel %vm488, %v483, %v315
    %v491 = vsel %vm488, %v484, %v317
    %v492 = vsel %vm488, %v485, %v319
    %v493 = vsel %vm488, %v486, %v321
    %v494 = vsel %vm488, %v487, %v323
    %vm495 = vcmask 785408
    %v496 = vsel %vm495, %v489, %v346
    %v497 = vsel %vm495, %v490, %v348
    %v498 = vsel %vm495, %v491, %v350
    %v499 = vsel %vm495, %v492, %v352
    %v500 = vsel %vm495, %v493, %v354
    %v501 = vsel %vm495, %v494, %v356
    %v502 = vsel %vm481, %v366, %v399
    %v503 = vsel %vm481, %v368, %v401
    %v504 = vsel %vm481, %v370, %v403
    %v505 = vsel %vm481, %v373, %v405
    %v506 = vsel %vm481, %v375, %v407
    %v507 = vsel %vm481, %v377, %v409
    %v508 = vsel %vm488, %v502, %v432
    %v509 = vsel %vm488, %v503, %v434
    %v510 = vsel %vm488, %v504, %v436
    %v511 = vsel %vm488, %v505, %v438
    %v512 = vsel %vm488, %v506, %v440
    %v513 = vsel %vm488, %v507, %v442
    %v514 = vsel %vm495, %v508, %v464
    %v515 = vsel %vm495, %v509, %v466
    %v516 = vsel %vm495, %v510, %v468
    %v517 = vsel %vm495, %v511, %v470
    %v518 = vsel %vm495, %v512, %v472
    %v519 = vsel %vm495, %v513, %v474
    %v520 = vld [vmem:[%s3] sm:$0xff]
    %v521 = vld [vmem:[%s3 + $0x8] sm:$0xff]
    %v522 = vld [vmem:[%s3 + $0x10] sm:$0xff]
    %v523 = vld [vmem:[%s3 + $0x18] sm:$0xff]
    %v524 = vld [vmem:[%s3 + $0x20] sm:$0xff]
    %v525 = vld [vmem:[%s3 + $0x28] sm:$0xff]
    %v526 = vld [vmem:[%s3 + $0x30] sm:$0xff]
    %v527 = vld [vmem:[%s3 + $0x38] sm:$0xff]
    %v528 = vld [vmem:[%s3 + $0x40] sm:$0xff]
    %v529 = vld [vmem:[%s3 + $0x48] sm:$0xff]
    %v530 = vld [vmem:[%s3 + $0x50] sm:$0xff]
    %v531 = vld [vmem:[%s3 + $0x58] sm:$0xff]
    %v532 = vld [vmem:[%s3 + $0x60] sm:$0xff]
    %v533 = vld [vmem:[%s3 + $0x68] sm:$0xff]
    %v534 = vld [vmem:[%s3 + $0x70] sm:$0xff]
    %v535 = vld [vmem:[%s3 + $0x78] sm:$0xff]
    %v536 = vld [vmem:[%s3 + $0x80] sm:$0xff]
    %v537 = vld [vmem:[%s3 + $0x88] sm:$0xff]
    %v538 = vld [vmem:[%s3 + $0x90] sm:$0xff]
    %v539 = vld [vmem:[%s3 + $0x98] sm:$0xff]
    %v540 = vld [vmem:[%s3 + $0xa0] sm:$0xff]
    %v541 = vld [vmem:[%s3 + $0xa8] sm:$0xff]
    %v542 = vld [vmem:[%s3 + $0xb0] sm:$0xff]
    %v543 = vld [vmem:[%s3 + $0xb8] sm:$0xff]
    %v544 = vld [vmem:[%s3 + $0xc0] sm:$0xff]
    %v545 = vld [vmem:[%s3 + $0xc8] sm:$0xff]
    %v546 = vld [vmem:[%s3 + $0xd0] sm:$0xff]
    %v547 = vld [vmem:[%s3 + $0xd8] sm:$0xff]
    %v548 = vld [vmem:[%s3 + $0xe0] sm:$0xff]
    %v549 = vld [vmem:[%s3 + $0xe8] sm:$0xff]
    %v550 = vld [vmem:[%s3 + $0xf0] sm:$0xff]
    %v551 = vld [vmem:[%s3 + $0xf8] sm:$0xff]
    %v552 = vld [vmem:[%s4] sm:$0x1]
    %v554 = vlaneseq
    %v555 = vshrl.u32 %v554, 7
    %v556 = vsub.s32 0, %v555
    %v557 = vrot.slane %v552, %v556
    %559 = vmatprep.subr.mxu0 0.0
    %560 = vmatpush1.msra.mxu0 %v520
    %561 = vmatprep.subr.mxu0 0.0
    %562 = vmatpush1.msra.mxu0 %v521
    %563 = vmatprep.subr.mxu0 0.0
    %564 = vmatpush1.msra.mxu0 %v522
    %565 = vmatprep.subr.mxu0 0.0
    %566 = vmatpush1.msra.mxu0 %v523
    %567 = vmatprep.subr.mxu0 0.0
    %568 = vmatpush1.msra.mxu0 %v524
    %569 = vmatprep.subr.mxu0 0.0
    %570 = vmatpush1.msra.mxu0 %v525
    %571 = vmatprep.subr.mxu0 0.0
    %572 = vmatpush1.msra.mxu0 %v526
    %573 = vmatprep.subr.mxu0 0.0
    %574 = vmatpush1.msra.mxu0 %v527
    %575 = vmatprep.subr.mxu0 0.0
    %576 = vmatpush1.msra.mxu0 %v528
    %577 = vmatprep.subr.mxu0 0.0
    %578 = vmatpush1.msra.mxu0 %v529
    %579 = vmatprep.subr.mxu0 0.0
    %580 = vmatpush1.msra.mxu0 %v530
    %581 = vmatprep.subr.mxu0 0.0
    %582 = vmatpush1.msra.mxu0 %v531
    %583 = vmatprep.subr.mxu0 0.0
    %584 = vmatpush1.msra.mxu0 %v532
    %585 = vmatprep.subr.mxu0 0.0
    %586 = vmatpush1.msra.mxu0 %v533
    %587 = vmatprep.subr.mxu0 0.0
    %588 = vmatpush1.msra.mxu0 %v534
    %589 = vmatprep.subr.mxu0 0.0
    %590 = vmatpush1.msra.mxu0 %v535
    %591 = vmatprep.subr.mxu0 0.0
    %592 = vmatpush1.msra.mxu0 %v536
    %593 = vmatprep.subr.mxu0 0.0
    %594 = vmatpush1.msra.mxu0 %v537
    %595 = vmatprep.subr.mxu0 0.0
    %596 = vmatpush1.msra.mxu0 %v538
    %597 = vmatprep.subr.mxu0 0.0
    %598 = vmatpush1.msra.mxu0 %v539
    %599 = vmatprep.subr.mxu0 0.0
    %600 = vmatpush1.msra.mxu0 %v540
    %601 = vmatprep.subr.mxu0 0.0
    %602 = vmatpush1.msra.mxu0 %v541
    %603 = vmatprep.subr.mxu0 0.0
    %604 = vmatpush1.msra.mxu0 %v542
    %605 = vmatprep.subr.mxu0 0.0
    %606 = vmatpush1.msra.mxu0 %v543
    %607 = vmatprep.subr.mxu0 0.0
    %608 = vmatpush1.msra.mxu0 %v544
    %609 = vmatprep.subr.mxu0 0.0
    %610 = vmatpush1.msra.mxu0 %v545
    %611 = vmatprep.subr.mxu0 0.0
    %612 = vmatpush1.msra.mxu0 %v546
    %613 = vmatprep.subr.mxu0 0.0
    %614 = vmatpush1.msra.mxu0 %v547
    %615 = vmatprep.subr.mxu0 0.0
    %616 = vmatpush1.msra.mxu0 %v548
    %617 = vmatprep.subr.mxu0 0.0
    %618 = vmatpush1.msra.mxu0 %v549
    %619 = vmatprep.subr.mxu0 0.0
    %620 = vmatpush1.msra.mxu0 %v550
    %621 = vmatprep.subr.mxu0 0.0
    %622 = vmatpush1.msra.mxu0 %v551
    %623 = vmatprep.mubr.f32.mxu0 %v514
    %624 = vmatmul.mubr.f32.gmra.mrb[0].mxu0 %v496
    %v625 = vpop.f32.mrb[0].mxu0
    %v626 = vadd.f32 %v557, %v625
    %v627 = vpop.f32.mrb[0].mxu0
    %628 = vmatprep.mubr.f32.mxu0 %v515
    %629 = vmatmul.mubr.f32.gmra.mrb[0].mxu0 %v497
    %v630 = vpop.f32.mrb[0].mxu0
    %v631 = vadd.f32 %v557, %v630
    %v632 = vpop.f32.mrb[0].mxu0
    %633 = vmatprep.mubr.f32.mxu0 %v516
    %634 = vmatmul.mubr.f32.gmra.mrb[0].mxu0 %v498
    %v635 = vpop.f32.mrb[0].mxu0
    %v636 = vadd.f32 %v557, %v635
    %v637 = vpop.f32.mrb[0].mxu0
    %638 = vmatprep.mubr.f32.mxu0 %v517
    %639 = vmatmul.mubr.f32.gmra.mrb[0].mxu0 %v499
    %v640 = vpop.f32.mrb[0].mxu0
    %v641 = vadd.f32 %v557, %v640
    %v642 = vpop.f32.mrb[0].mxu0
    %643 = vmatprep.mubr.f32.mxu0 %v518
    %644 = vmatmul.mubr.f32.gmra.mrb[0].mxu0 %v500
    %v645 = vpop.f32.mrb[0].mxu0
    %v646 = vadd.f32 %v557, %v645
    %v647 = vpop.f32.mrb[0].mxu0
    %648 = vmatprep.mubr.f32.mxu0 %v519
    %649 = vmatmul.mubr.f32.gmra.mrb[0].mxu0 %v501
    %v650 = vpop.f32.mrb[0].mxu0
    %v651 = vadd.f32 %v557, %v650
    %v652 = vpop.f32.mrb[0].mxu0
    %653 = vdwg.mxu0
    %v654 = vmax.f32 %v626, 0.0
    %v655 = vmax.f32 %v631, 0.0
    %v656 = vmax.f32 %v636, 0.0
    %v657 = vmax.f32 %v641, 0.0
    %v658 = vmax.f32 %v646, 0.0
    %v659 = vmax.f32 %v651, 0.0
    %v666 = vrot.slane %v654, 4
    %v667 = vrot.slane %v655, 4
    %v668 = vsel %vm363, %v666, %v667
    %v669 = vrot.slane %v656, 4
    %v670 = vsel %vm363, %v667, %v669
    %v671 = vrot.slane %v657, 4
    %v672 = vrot.slane %v658, 4
    %v673 = vsel %vm363, %v671, %v672
    %v674 = vrot.slane %v659, 4
    %v675 = vsel %vm363, %v672, %v674
    %v682 = vsel %vm363, 0.0, %v666
    %v683 = vsel %vm363, 0.0, %v671
    %v687 = vrot.slane 0.0, 1
    %v688 = vrot.slane %v682, 1
    %v689 = vsel %vm264, %v687, %v688
    %v690 = vrot.slane %v668, 1
    %v691 = vsel %vm264, %v688, %v690
    %v692 = vrot.slane %v670, 1
    %v693 = vsel %vm264, %v690, %v692
    %v694 = vrot.slane %v683, 1
    %v695 = vsel %vm264, %v687, %v694
    %v696 = vrot.slane %v673, 1
    %v697 = vsel %vm264, %v694, %v696
    %v698 = vrot.slane %v675, 1
    %v699 = vsel %vm264, %v696, %v698
    %700 = vrot.lane.b32.xlu0 %v689, 32
    %v701 = vpop.permute.xlu0 %700
    %702 = vrot.lane.b32.xlu0 %v691, 32
    %v703 = vpop.permute.xlu0 %702
    %704 = vrot.lane.b32.xlu0 %v693, 32
    %v705 = vpop.permute.xlu0 %704
    %706 = vrot.lane.b32.xlu0 %v692, 32
    %v707 = vpop.permute.xlu0 %706
    %708 = vrot.lane.b32.xlu0 %v695, 32
    %v709 = vpop.permute.xlu0 %708
    %710 = vrot.lane.b32.xlu0 %v697, 32
    %v711 = vpop.permute.xlu0 %710
    %712 = vrot.lane.b32.xlu0 %v699, 32
    %v713 = vpop.permute.xlu0 %712
    %714 = vrot.lane.b32.xlu0 %v698, 32
    %v715 = vpop.permute.xlu0 %714
    %v724 = vrot.slane 0.0, 2
    %v725 = vrot.slane %v682, 2
    %v726 = vsel %vm297, %v724, %v725
    %v727 = vrot.slane %v668, 2
    %v728 = vsel %vm297, %v725, %v727
    %v729 = vrot.slane %v670, 2
    %v730 = vsel %vm297, %v727, %v729
    %v731 = vrot.slane %v683, 2
    %v732 = vsel %vm297, %v724, %v731
    %v733 = vrot.slane %v673, 2
    %v734 = vsel %vm297, %v731, %v733
    %v735 = vrot.slane %v675, 2
    %v736 = vsel %vm297, %v733, %v735
    %737 = vrot.lane.b32.xlu0 %v726, 64
    %v738 = vpop.permute.xlu0 %737
    %739 = vrot.lane.b32.xlu0 %v728, 64
    %v740 = vpop.permute.xlu0 %739
    %741 = vrot.lane.b32.xlu0 %v730, 64
    %v742 = vpop.permute.xlu0 %741
    %743 = vrot.lane.b32.xlu0 %v729, 64
    %v744 = vpop.permute.xlu0 %743
    %745 = vrot.lane.b32.xlu0 %v732, 64
    %v746 = vpop.permute.xlu0 %745
    %747 = vrot.lane.b32.xlu0 %v734, 64
    %v748 = vpop.permute.xlu0 %747
    %749 = vrot.lane.b32.xlu0 %v736, 64
    %v750 = vpop.permute.xlu0 %749
    %751 = vrot.lane.b32.xlu0 %v735, 64
    %v752 = vpop.permute.xlu0 %751
    %v761 = vrot.slane %v682, 3
    %v762 = vrot.slane %v668, 3
    %v763 = vsel %vm330, %v761, %v762
    %v764 = vrot.slane %v670, 3
    %v765 = vsel %vm330, %v762, %v764
    %v766 = vrot.slane %v683, 3
    %v767 = vrot.slane %v673, 3
    %v768 = vsel %vm330, %v766, %v767
    %v769 = vrot.slane %v675, 3
    %v770 = vsel %vm330, %v767, %v769
    %771 = vrot.lane.b32.xlu0 %v761, 96
    %v772 = vpop.permute.xlu0 %771
    %773 = vrot.lane.b32.xlu0 %v763, 96
    %v774 = vpop.permute.xlu0 %773
    %775 = vrot.lane.b32.xlu0 %v765, 96
    %v776 = vpop.permute.xlu0 %775
    %777 = vrot.lane.b32.xlu0 %v764, 96
    %v778 = vpop.permute.xlu0 %777
    %779 = vrot.lane.b32.xlu0 %v766, 96
    %v780 = vpop.permute.xlu0 %779
    %781 = vrot.lane.b32.xlu0 %v768, 96
    %v782 = vpop.permute.xlu0 %781
    %783 = vrot.lane.b32.xlu0 %v770, 96
    %v784 = vpop.permute.xlu0 %783
    %785 = vrot.lane.b32.xlu0 %v769, 96
    %v786 = vpop.permute.xlu0 %785
    %v795 = vrot.slane %v682, 4
    %v796 = vrot.slane %v668, 4
    %v797 = vsel %vm363, %v795, %v796
    %v798 = vrot.slane %v670, 4
    %v799 = vsel %vm363, %v796, %v798
    %v800 = vrot.slane %v669, 4
    %v801 = vsel %vm363, %v798, %v800
    %v802 = vrot.slane %v683, 4
    %v803 = vrot.slane %v673, 4
    %v804 = vsel %vm363, %v802, %v803
    %v805 = vrot.slane %v675, 4
    %v806 = vsel %vm363, %v803, %v805
    %v807 = vrot.slane %v674, 4
    %v808 = vsel %vm363, %v805, %v807
    %v817 = vrot.slane %v682, 5
    %v818 = vrot.slane %v668, 5
    %v819 = vsel %vm132, %v817, %v818
    %v820 = vrot.slane %v670, 5
    %v821 = vsel %vm132, %v818, %v820
    %v822 = vrot.slane %v669, 5
    %v823 = vsel %vm132, %v820, %v822
    %v824 = vrot.slane %v683, 5
    %v825 = vrot.slane %v673, 5
    %v826 = vsel %vm132, %v824, %v825
    %v827 = vrot.slane %v675, 5
    %v828 = vsel %vm132, %v825, %v827
    %v829 = vrot.slane %v674, 5
    %v830 = vsel %vm132, %v827, %v829
    %831 = vrot.lane.b32.xlu0 %v817, 32
    %v832 = vpop.permute.xlu0 %831
    %833 = vrot.lane.b32.xlu0 %v819, 32
    %v834 = vpop.permute.xlu0 %833
    %835 = vrot.lane.b32.xlu0 %v821, 32
    %v836 = vpop.permute.xlu0 %835
    %837 = vrot.lane.b32.xlu0 %v823, 32
    %v838 = vpop.permute.xlu0 %837
    %839 = vrot.lane.b32.xlu0 %v824, 32
    %v840 = vpop.permute.xlu0 %839
    %841 = vrot.lane.b32.xlu0 %v826, 32
    %v842 = vpop.permute.xlu0 %841
    %843 = vrot.lane.b32.xlu0 %v828, 32
    %v844 = vpop.permute.xlu0 %843
    %845 = vrot.lane.b32.xlu0 %v830, 32
    %v846 = vpop.permute.xlu0 %845
    %v855 = vrot.slane %v682, 6
    %v856 = vrot.slane %v668, 6
    %v857 = vsel %vm416, %v855, %v856
    %v858 = vrot.slane %v670, 6
    %v859 = vsel %vm416, %v856, %v858
    %v860 = vrot.slane %v669, 6
    %v861 = vsel %vm416, %v858, %v860
    %v862 = vrot.slane %v683, 6
    %v863 = vrot.slane %v673, 6
    %v864 = vsel %vm416, %v862, %v863
    %v865 = vrot.slane %v675, 6
    %v866 = vsel %vm416, %v863, %v865
    %v867 = vrot.slane %v674, 6
    %v868 = vsel %vm416, %v865, %v867
    %869 = vrot.lane.b32.xlu0 %v855, 64
    %v870 = vpop.permute.xlu0 %869
    %871 = vrot.lane.b32.xlu0 %v857, 64
    %v872 = vpop.permute.xlu0 %871
    %873 = vrot.lane.b32.xlu0 %v859, 64
    %v874 = vpop.permute.xlu0 %873
    %875 = vrot.lane.b32.xlu0 %v861, 64
    %v876 = vpop.permute.xlu0 %875
    %877 = vrot.lane.b32.xlu0 %v862, 64
    %v878 = vpop.permute.xlu0 %877
    %879 = vrot.lane.b32.xlu0 %v864, 64
    %v880 = vpop.permute.xlu0 %879
    %881 = vrot.lane.b32.xlu0 %v866, 64
    %v882 = vpop.permute.xlu0 %881
    %883 = vrot.lane.b32.xlu0 %v868, 64
    %v884 = vpop.permute.xlu0 %883
    %v893 = vrot.slane %v682, 7
    %v894 = vrot.slane %v668, 7
    %v895 = vsel %vm237, %v893, %v894
    %v896 = vrot.slane %v670, 7
    %v897 = vsel %vm237, %v894, %v896
    %v898 = vrot.slane %v669, 7
    %v899 = vsel %vm237, %v896, %v898
    %v900 = vrot.slane %v683, 7
    %v901 = vrot.slane %v673, 7
    %v902 = vsel %vm237, %v900, %v901
    %v903 = vrot.slane %v675, 7
    %v904 = vsel %vm237, %v901, %v903
    %v905 = vrot.slane %v674, 7
    %v906 = vsel %vm237, %v903, %v905
    %907 = vrot.lane.b32.xlu0 %v893, 96
    %v908 = vpop.permute.xlu0 %907
    %909 = vrot.lane.b32.xlu0 %v895, 96
    %v910 = vpop.permute.xlu0 %909
    %911 = vrot.lane.b32.xlu0 %v897, 96
    %v912 = vpop.permute.xlu0 %911
    %913 = vrot.lane.b32.xlu0 %v899, 96
    %v914 = vpop.permute.xlu0 %913
    %915 = vrot.lane.b32.xlu0 %v900, 96
    %v916 = vpop.permute.xlu0 %915
    %917 = vrot.lane.b32.xlu0 %v902, 96
    %v918 = vpop.permute.xlu0 %917
    %919 = vrot.lane.b32.xlu0 %v904, 96
    %v920 = vpop.permute.xlu0 %919
    %921 = vrot.lane.b32.xlu0 %v906, 96
    %v922 = vpop.permute.xlu0 %921
    %v931 = vsel %vm481, 0.0, %v701
    %v932 = vsel %vm481, %v682, %v703
    %v933 = vsel %vm481, %v668, %v705
    %v934 = vsel %vm481, %v670, %v707
    %v935 = vsel %vm481, 0.0, %v709
    %v936 = vsel %vm481, %v683, %v711
    %v937 = vsel %vm481, %v673, %v713
    %v938 = vsel %vm481, %v675, %v715
    %v939 = vsel %vm488, %v931, %v738
    %v940 = vsel %vm488, %v932, %v740
    %v941 = vsel %vm488, %v933, %v742
    %v942 = vsel %vm488, %v934, %v744
    %v943 = vsel %vm488, %v935, %v746
    %v944 = vsel %vm488, %v936, %v748
    %v945 = vsel %vm488, %v937, %v750
    %v946 = vsel %vm488, %v938, %v752
    %v947 = vsel %vm495, %v939, %v772
    %v948 = vsel %vm495, %v940, %v774
    %v949 = vsel %vm495, %v941, %v776
    %v950 = vsel %vm495, %v942, %v778
    %v951 = vsel %vm495, %v943, %v780
    %v952 = vsel %vm495, %v944, %v782
    %v953 = vsel %vm495, %v945, %v784
    %v954 = vsel %vm495, %v946, %v786
    %v955 = vsel %vm481, %v795, %v832
    %v956 = vsel %vm481, %v797, %v834
    %v957 = vsel %vm481, %v799, %v836
    %v958 = vsel %vm481, %v801, %v838
    %v959 = vsel %vm481, %v802, %v840
    %v960 = vsel %vm481, %v804, %v842
    %v961 = vsel %vm481, %v806, %v844
    %v962 = vsel %vm481, %v808, %v846
    %v963 = vsel %vm488, %v955, %v870
    %v964 = vsel %vm488, %v956, %v872
    %v965 = vsel %vm488, %v957, %v874
    %v966 = vsel %vm488, %v958, %v876
    %v967 = vsel %vm488, %v959, %v878
    %v968 = vsel %vm488, %v960, %v880
    %v969 = vsel %vm488, %v961, %v882
    %v970 = vsel %vm488, %v962, %v884
    %v971 = vsel %vm495, %v963, %v908
    %v972 = vsel %vm495, %v964, %v910
    %v973 = vsel %vm495, %v965, %v912
    %v974 = vsel %vm495, %v966, %v914
    %v975 = vsel %vm495, %v967, %v916
    %v976 = vsel %vm495, %v968, %v918
    %v977 = vsel %vm495, %v969, %v920
    %v978 = vsel %vm495, %v970, %v922
    %v995 = vrot.slane %v947, 5
    %v996 = vrot.slane %v948, 5
    %v997 = vsel %vm132, %v995, %v996
    %v998 = vrot.slane %v971, 5
    %v999 = vrot.slane %v972, 5
    %v1000 = vsel %vm132, %v998, %v999
    %v1001 = vrot.slane %v949, 5
    %v1002 = vsel %vm132, %v996, %v1001
    %v1003 = vrot.slane %v973, 5
    %v1004 = vsel %vm132, %v999, %v1003
    %v1005 = vrot.slane %v950, 5
    %v1006 = vsel %vm132, %v1001, %v1005
    %v1007 = vrot.slane %v974, 5
    %v1008 = vsel %vm132, %v1003, %v1007
    %v1009 = vrot.slane %v951, 5
    %v1010 = vrot.slane %v952, 5
    %v1011 = vsel %vm132, %v1009, %v1010
    %v1012 = vrot.slane %v975, 5
    %v1013 = vrot.slane %v976, 5
    %v1014 = vsel %vm132, %v1012, %v1013
    %v1015 = vrot.slane %v953, 5
    %v1016 = vsel %vm132, %v1010, %v1015
    %v1017 = vrot.slane %v977, 5
    %v1018 = vsel %vm132, %v1013, %v1017
    %v1019 = vrot.slane %v954, 5
    %v1020 = vsel %vm132, %v1015, %v1019
    %v1021 = vrot.slane %v978, 5
    %v1022 = vsel %vm132, %v1017, %v1021
    %v1035 = vld [vmem:[%s7] sm:$0x1]
    %v1036 = vld [vmem:[%s5] sm:$0xff]
    %v1037 = vld [vmem:[%s5 + $0x8] sm:$0xff]
    %v1038 = vld [vmem:[%s5 + $0x10] sm:$0xff]
    %v1039 = vld [vmem:[%s5 + $0x18] sm:$0xff]
    %v1040 = vld [vmem:[%s5 + $0x20] sm:$0xff]
    %v1041 = vld [vmem:[%s5 + $0x28] sm:$0xff]
    %v1042 = vld [vmem:[%s5 + $0x30] sm:$0xff]
    %v1043 = vld [vmem:[%s5 + $0x38] sm:$0xff]
    %v1044 = vld [vmem:[%s5 + $0x40] sm:$0xff]
    %v1045 = vld [vmem:[%s5 + $0x48] sm:$0xff]
    %v1046 = vld [vmem:[%s5 + $0x50] sm:$0xff]
    %v1047 = vld [vmem:[%s5 + $0x58] sm:$0xff]
    %v1048 = vld [vmem:[%s5 + $0x60] sm:$0xff]
    %v1049 = vld [vmem:[%s5 + $0x68] sm:$0xff]
    %v1050 = vld [vmem:[%s5 + $0x70] sm:$0xff]
    %v1051 = vld [vmem:[%s5 + $0x78] sm:$0xff]
    %v1052 = vld [vmem:[%s5 + $0x80] sm:$0xff]
    %v1053 = vld [vmem:[%s5 + $0x88] sm:$0xff]
    %v1054 = vld [vmem:[%s5 + $0x90] sm:$0xff]
    %v1055 = vld [vmem:[%s5 + $0x98] sm:$0xff]
    %v1056 = vld [vmem:[%s5 + $0xa0] sm:$0xff]
    %v1057 = vld [vmem:[%s5 + $0xa8] sm:$0xff]
    %v1058 = vld [vmem:[%s5 + $0xb0] sm:$0xff]
    %v1059 = vld [vmem:[%s5 + $0xb8] sm:$0xff]
    %v1060 = vld [vmem:[%s5 + $0xc0] sm:$0xff]
    %v1061 = vld [vmem:[%s5 + $0xc8] sm:$0xff]
    %v1062 = vld [vmem:[%s5 + $0xd0] sm:$0xff]
    %v1063 = vld [vmem:[%s5 + $0xd8] sm:$0xff]
    %v1064 = vld [vmem:[%s5 + $0xe0] sm:$0xff]
    %v1065 = vld [vmem:[%s5 + $0xe8] sm:$0xff]
    %v1066 = vld [vmem:[%s5 + $0xf0] sm:$0xff]
    %v1067 = vld [vmem:[%s5 + $0xf8] sm:$0xff]
    %v1068 = vlaneseq
    %v1069 = vshrl.u32 %v1068, 7
    %v1070 = vsub.s32 0, %v1069
    %v1071 = vrot.slane %v1035, %v1070
    %1072 = vmatprep.subr.mxu0 0.0
    %1073 = vmatpush1.msra.mxu0 %v1036
    %1074 = vmatprep.subr.mxu0 0.0
    %1075 = vmatpush1.msra.mxu0 %v1037
    %1076 = vmatprep.subr.mxu0 0.0
    %1077 = vmatpush1.msra.mxu0 %v1038
    %1078 = vmatprep.subr.mxu0 0.0
    %1079 = vmatpush1.msra.mxu0 %v1039
    %1080 = vmatprep.subr.mxu0 0.0
    %1081 = vmatpush1.msra.mxu0 %v1040
    %1082 = vmatprep.subr.mxu0 0.0
    %1083 = vmatpush1.msra.mxu0 %v1041
    %1084 = vmatprep.subr.mxu0 0.0
    %1085 = vmatpush1.msra.mxu0 %v1042
    %1086 = vmatprep.subr.mxu0 0.0
    %1087 = vmatpush1.msra.mxu0 %v1043
    %1088 = vmatprep.subr.mxu0 0.0
    %1089 = vmatpush1.msra.mxu0 %v1044
    %1090 = vmatprep.subr.mxu0 0.0
    %1091 = vmatpush1.msra.mxu0 %v1045
    %1092 = vmatprep.subr.mxu0 0.0
    %1093 = vmatpush1.msra.mxu0 %v1046
    %1094 = vmatprep.subr.mxu0 0.0
    %1095 = vmatpush1.msra.mxu0 %v1047
    %1096 = vmatprep.subr.mxu0 0.0
    %1097 = vmatpush1.msra.mxu0 %v1048
    %1098 = vmatprep.subr.mxu0 0.0
    %1099 = vmatpush1.msra.mxu0 %v1049
    %1100 = vmatprep.subr.mxu0 0.0
    %1101 = vmatpush1.msra.mxu0 %v1050
    %1102 = vmatprep.subr.mxu0 0.0
    %1103 = vmatpush1.msra.mxu0 %v1051
    %1104 = vmatprep.subr.mxu0 0.0
    %1105 = vmatpush1.msra.mxu0 %v1052
    %1106 = vmatprep.subr.mxu0 0.0
    %1107 = vmatpush1.msra.mxu0 %v1053
    %1108 = vmatprep.subr.mxu0 0.0
    %1109 = vmatpush1.msra.mxu0 %v1054
    %1110 = vmatprep.subr.mxu0 0.0
    %1111 = vmatpush1.msra.mxu0 %v1055
    %1112 = vmatprep.subr.mxu0 0.0
    %1113 = vmatpush1.msra.mxu0 %v1056
    %1114 = vmatprep.subr.mxu0 0.0
    %1115 = vmatpush1.msra.mxu0 %v1057
    %1116 = vmatprep.subr.mxu0 0.0
    %1117 = vmatpush1.msra.mxu0 %v1058
    %1118 = vmatprep.subr.mxu0 0.0
    %1119 = vmatpush1.msra.mxu0 %v1059
    %1120 = vmatprep.subr.mxu0 0.0
    %1121 = vmatpush1.msra.mxu0 %v1060
    %1122 = vmatprep.subr.mxu0 0.0
    %1123 = vmatpush1.msra.mxu0 %v1061
    %1124 = vmatprep.subr.mxu0 0.0
    %1125 = vmatpush1.msra.mxu0 %v1062
    %1126 = vmatprep.subr.mxu0 0.0
    %1127 = vmatpush1.msra.mxu0 %v1063
    %1128 = vmatprep.subr.mxu0 0.0
    %1129 = vmatpush1.msra.mxu0 %v1064
    %1130 = vmatprep.subr.mxu0 0.0
    %1131 = vmatpush1.msra.mxu0 %v1065
    %1132 = vmatprep.subr.mxu0 0.0
    %1133 = vmatpush1.msra.mxu0 %v1066
    %1134 = vmatprep.subr.mxu0 0.0
    %1135 = vmatpush1.msra.mxu0 %v1067
    %1136 = vmatprep.mubr.f32.mxu0 %v1000
    %1137 = vmatmul.mubr.f32.gmra.mrb[0].mxu0 %v997
    %v1138 = vpop.f32.mrb[0].mxu0
    %v1139 = vadd.f32 %v1071, %v1138
    %v1140 = vpop.f32.mrb[0].mxu0
    %1141 = vmatprep.mubr.f32.mxu0 %v1004
    %1142 = vmatmul.mubr.f32.gmra.mrb[0].mxu0 %v1002
    %v1143 = vpop.f32.mrb[0].mxu0
    %v1144 = vadd.f32 %v1071, %v1143
    %v1145 = vpop.f32.mrb[0].mxu0
    %1146 = vmatprep.mubr.f32.mxu0 %v1008
    %1147 = vmatmul.mubr.f32.gmra.mrb[0].mxu0 %v1006
    %v1148 = vpop.f32.mrb[0].mxu0
    %v1149 = vadd.f32 %v1071, %v1148
    %v1150 = vpop.f32.mrb[0].mxu0
    %1151 = vmatprep.mubr.f32.mxu0 %v1014
    %1152 = vmatmul.mubr.f32.gmra.mrb[0].mxu0 %v1011
    %v1153 = vpop.f32.mrb[0].mxu0
    %v1154 = vadd.f32 %v1071, %v1153
    %v1155 = vpop.f32.mrb[0].mxu0
    %1156 = vmatprep.mubr.f32.mxu0 %v1018
    %1157 = vmatmul.mubr.f32.gmra.mrb[0].mxu0 %v1016
    %v1158 = vpop.f32.mrb[0].mxu0
    %v1159 = vadd.f32 %v1071, %v1158
    %v1160 = vpop.f32.mrb[0].mxu0
    %1161 = vmatprep.mubr.f32.mxu0 %v1022
    %1162 = vmatmul.mubr.f32.gmra.mrb[0].mxu0 %v1020
    %v1163 = vpop.f32.mrb[0].mxu0
    %v1164 = vadd.f32 %v1071, %v1163
    %v1165 = vpop.f32.mrb[0].mxu0
    %1166 = vdwg.mxu0
    %v1167 = vtanh.pop %v1139
    %v1168 = vtanh.pop %v1144
    %v1169 = vtanh.pop %v1149
    %v1170 = vtanh.pop %v1154
    %v1171 = vtanh.pop %v1159
    %v1172 = vtanh.pop %v1164
    %v1173 = vxor.u32 %v1139, 2147483648
    %v1174 = vxor.u32 %v1144, 2147483648
    %v1175 = vxor.u32 %v1149, 2147483648
    %v1176 = vxor.u32 %v1154, 2147483648
    %v1177 = vxor.u32 %v1159, 2147483648
    %v1178 = vxor.u32 %v1164, 2147483648
    %v1179 = vmul.f32 %v1173, 1.442695
    %v1180 = vpow.pop %v1179
    %v1181 = vmul.f32 %v1174, 1.442695
    %v1182 = vpow.pop %v1181
    %v1183 = vmul.f32 %v1175, 1.442695
    %v1184 = vpow.pop %v1183
    %v1185 = vmul.f32 %v1176, 1.442695
    %v1186 = vpow.pop %v1185
    %v1187 = vmul.f32 %v1177, 1.442695
    %v1188 = vpow.pop %v1187
    %v1189 = vmul.f32 %v1178, 1.442695
    %v1190 = vpow.pop %v1189
    %v1191 = vadd.f32 %v1180, 1.0
    %v1192 = vadd.f32 %v1182, 1.0
    %v1193 = vadd.f32 %v1184, 1.0
    %v1194 = vadd.f32 %v1186, 1.0
    %v1195 = vadd.f32 %v1188, 1.0
    %v1196 = vadd.f32 %v1190, 1.0
    %v1197 = vrcp.pop %v1191
    %v1198 = vmul.f32 1.0, %v1197
    %v1199 = vrcp.pop %v1192
    %v1200 = vmul.f32 1.0, %v1199
    %v1201 = vrcp.pop %v1193
    %v1202 = vmul.f32 1.0, %v1201
    %v1203 = vrcp.pop %v1194
    %v1204 = vmul.f32 1.0, %v1203
    %v1205 = vrcp.pop %v1195
    %v1206 = vmul.f32 1.0, %v1205
    %v1207 = vrcp.pop %v1196
    %v1208 = vmul.f32 1.0, %v1207
    %1215 = vrot.lane.b32.xlu0 %v1198, 96
    %v1216 = vpop.permute.xlu0 %1215
    %1217 = vrot.lane.b32.xlu0 %v1200, 96
    %v1218 = vpop.permute.xlu0 %1217
    %1219 = vrot.lane.b32.xlu0 %v1202, 96
    %v1220 = vpop.permute.xlu0 %1219
    %1221 = vrot.lane.b32.xlu0 %v1204, 96
    %v1222 = vpop.permute.xlu0 %1221
    %1223 = vrot.lane.b32.xlu0 %v1206, 96
    %v1224 = vpop.permute.xlu0 %1223
    %1225 = vrot.lane.b32.xlu0 %v1208, 96
    %v1226 = vpop.permute.xlu0 %1225
    %v1233 = vmul.f32 %v1167, %v1216
    %v1234 = vmul.f32 %v1168, %v1218
    %v1235 = vmul.f32 %v1169, %v1220
    %v1236 = vmul.f32 %v1170, %v1222
    %v1237 = vmul.f32 %v1171, %v1224
    %v1238 = vmul.f32 %v1172, %v1226
    %v1239 = vld [vmem:[%s6] sm:$0xff]
    %v1240 = vld [vmem:[%s6 + $0x8] sm:$0xff]
    %v1241 = vld [vmem:[%s6 + $0x10] sm:$0xff]
    %v1242 = vld [vmem:[%s6 + $0x18] sm:$0xff]
    %1244 = vrot.lane.b32.xlu0 %v1071, 64
    %v1245 = vpop.permute.xlu0 %1244
    %v1248 = vsel %vm481, %v1233, 0
    %v1251 = vsel %vm481, %v1234, 0
    %v1254 = vsel %vm481, %v1235, 0
    %v1257 = vsel %vm481, %v1236, 0
    %v1260 = vsel %vm481, %v1237, 0
    %v1263 = vsel %vm481, %v1238, 0
    %1265 = vmatprep.subr.mxu0 0.0
    %1266 = vmatpush1.msra.mxu0 %v1239
    %1267 = vmatprep.subr.mxu0 0.0
    %1268 = vmatpush1.msra.mxu0 %v1240
    %1269 = vmatprep.subr.mxu0 0.0
    %1270 = vmatpush1.msra.mxu0 %v1241
    %1271 = vmatprep.subr.mxu0 0.0
    %1272 = vmatpush1.msra.mxu0 %v1242
    %1273 = vmatprep.subr.mxu0 0.0
    %1274 = vmatpush1.msra.mxu0 0.0
    %1275 = vmatprep.subr.mxu0 0.0
    %1276 = vmatpush1.msra.mxu0 0.0
    %1277 = vmatprep.subr.mxu0 0.0
    %1278 = vmatpush1.msra.mxu0 0.0
    %1279 = vmatprep.subr.mxu0 0.0
    %1280 = vmatpush1.msra.mxu0 0.0
    %1281 = vmatprep.subr.mxu0 0.0
    %1282 = vmatpush1.msra.mxu0 0.0
    %1283 = vmatprep.subr.mxu0 0.0
    %1284 = vmatpush1.msra.mxu0 0.0
    %1285 = vmatprep.subr.mxu0 0.0
    %1286 = vmatpush1.msra.mxu0 0.0
    %1287 = vmatprep.subr.mxu0 0.0
    %1288 = vmatpush1.msra.mxu0 0.0
    %1289 = vmatprep.subr.mxu0 0.0
    %1290 = vmatpush1.msra.mxu0 0.0
    %1291 = vmatprep.subr.mxu0 0.0
    %1292 = vmatpush1.msra.mxu0 0.0
    %1293 = vmatprep.subr.mxu0 0.0
    %1294 = vmatpush1.msra.mxu0 0.0
    %1295 = vmatprep.subr.mxu0 0.0
    %1296 = vmatpush1.msra.mxu0 0.0
    %1297 = vmatprep.subr.mxu0 0.0
    %1298 = vmatpush1.msra.mxu0 0.0
    %1299 = vmatprep.subr.mxu0 0.0
    %1300 = vmatpush1.msra.mxu0 0.0
    %1301 = vmatprep.subr.mxu0 0.0
    %1302 = vmatpush1.msra.mxu0 0.0
    %1303 = vmatprep.subr.mxu0 0.0
    %1304 = vmatpush1.msra.mxu0 0.0
    %1305 = vmatprep.subr.mxu0 0.0
    %1306 = vmatpush1.msra.mxu0 0.0
    %1307 = vmatprep.subr.mxu0 0.0
    %1308 = vmatpush1.msra.mxu0 0.0
    %1309 = vmatprep.subr.mxu0 0.0
    %1310 = vmatpush1.msra.mxu0 0.0
    %1311 = vmatprep.subr.mxu0 0.0
    %1312 = vmatpush1.msra.mxu0 0.0
    %1313 = vmatprep.subr.mxu0 0.0
    %1314 = vmatpush1.msra.mxu0 0.0
    %1315 = vmatprep.subr.mxu0 0.0
    %1316 = vmatpush1.msra.mxu0 0.0
    %1317 = vmatprep.subr.mxu0 0.0
    %1318 = vmatpush1.msra.mxu0 0.0
    %1319 = vmatprep.subr.mxu0 0.0
    %1320 = vmatpush1.msra.mxu0 0.0
    %1321 = vmatprep.subr.mxu0 0.0
    %1322 = vmatpush1.msra.mxu0 0.0
    %1323 = vmatprep.subr.mxu0 0.0
    %1324 = vmatpush1.msra.mxu0 0.0
    %1325 = vmatprep.subr.mxu0 0.0
    %1326 = vmatpush1.msra.mxu0 0.0
    %1327 = vmatprep.subr.mxu0 0.0
    %1328 = vmatpush1.msra.mxu0 0.0
    %1329 = vmatprep.mubr.f32.mxu0 0.0
    %1330 = vmatmul.mubr.f32.gmra.mrb[0].mxu0 %v1248
    %v1331 = vpop.f32.mrb[0].mxu0
    %v1332 = vadd.f32 %v1245, %v1331
    %v1333 = vpop.f32.mrb[0].mxu0
    %1334 = vmatprep.mubr.f32.mxu0 0.0
    %1335 = vmatmul.mubr.f32.gmra.mrb[0].mxu0 %v1251
    %v1336 = vpop.f32.mrb[0].mxu0
    %v1337 = vadd.f32 %v1245, %v1336
    %v1338 = vpop.f32.mrb[0].mxu0
    %1339 = vmatprep.mubr.f32.mxu0 0.0
    %1340 = vmatmul.mubr.f32.gmra.mrb[0].mxu0 %v1254
    %v1341 = vpop.f32.mrb[0].mxu0
    %v1342 = vadd.f32 %v1245, %v1341
    %v1343 = vpop.f32.mrb[0].mxu0
    %1344 = vmatprep.mubr.f32.mxu0 0.0
    %1345 = vmatmul.mubr.f32.gmra.mrb[0].mxu0 %v1257
    %v1346 = vpop.f32.mrb[0].mxu0
    %v1347 = vadd.f32 %v1245, %v1346
    %v1348 = vpop.f32.mrb[0].mxu0
    %1349 = vmatprep.mubr.f32.mxu0 0.0
    %1350 = vmatmul.mubr.f32.gmra.mrb[0].mxu0 %v1260
    %v1351 = vpop.f32.mrb[0].mxu0
    %v1352 = vadd.f32 %v1245, %v1351
    %v1353 = vpop.f32.mrb[0].mxu0
    %1354 = vmatprep.mubr.f32.mxu0 0.0
    %1355 = vmatmul.mubr.f32.gmra.mrb[0].mxu0 %v1263
    %v1356 = vpop.f32.mrb[0].mxu0
    %v1357 = vadd.f32 %v1245, %v1356
    %v1358 = vpop.f32.mrb[0].mxu0
    %1359 = vdwg.mxu0
    %v1360 = vadd.f32 %v1332, %v654
    %v1361 = vadd.f32 %v1337, %v655
    %v1362 = vadd.f32 %v1342, %v656
    %v1363 = vadd.f32 %v1347, %v657
    %v1364 = vadd.f32 %v1352, %v658
    %v1365 = vadd.f32 %v1357, %v659
    %v1372 = vrot.slane %v1360, 4
    %v1373 = vrot.slane %v1361, 4
    %v1374 = vsel %vm363, %v1372, %v1373
    %v1375 = vrot.slane %v1362, 4
    %v1376 = vsel %vm363, %v1373, %v1375
    %v1377 = vrot.slane %v1363, 4
    %v1378 = vrot.slane %v1364, 4
    %v1379 = vsel %vm363, %v1377, %v1378
    %v1380 = vrot.slane %v1365, 4
    %v1381 = vsel %vm363, %v1378, %v1380
    %v1388 = vsel %vm363, 0.0, %v1372
    %v1389 = vsel %vm363, 0.0, %v1377
    %v1392 = vrot.slane %v1388, 2
    %v1393 = vsel %vm297, %v724, %v1392
    %v1394 = vrot.slane %v1374, 2
    %v1395 = vsel %vm297, %v1392, %v1394
    %v1396 = vrot.slane %v1389, 2
    %v1397 = vsel %vm297, %v724, %v1396
    %v1398 = vrot.slane %v1379, 2
    %v1399 = vsel %vm297, %v1396, %v1398
    %1400 = vrot.lane.b32.xlu0 %v724, 32
    %v1401 = vpop.permute.xlu0 %1400
    %1402 = vrot.lane.b32.xlu0 %v1393, 32
    %v1403 = vpop.permute.xlu0 %1402
    %1404 = vrot.lane.b32.xlu0 %v1395, 32
    %v1405 = vpop.permute.xlu0 %1404
    %1406 = vrot.lane.b32.xlu0 %v1394, 32
    %v1407 = vpop.permute.xlu0 %1406
    %1408 = vrot.lane.b32.xlu0 %v1397, 32
    %v1409 = vpop.permute.xlu0 %1408
    %1410 = vrot.lane.b32.xlu0 %v1399, 32
    %v1411 = vpop.permute.xlu0 %1410
    %1412 = vrot.lane.b32.xlu0 %v1398, 32
    %v1413 = vpop.permute.xlu0 %1412
    %v1421 = vrot.slane 0.0, 4
    %v1422 = vrot.slane %v1388, 4
    %v1423 = vsel %vm363, %v1421, %v1422
    %v1424 = vrot.slane %v1374, 4
    %v1425 = vsel %vm363, %v1422, %v1424
    %v1426 = vrot.slane %v1376, 4
    %v1427 = vsel %vm363, %v1424, %v1426
    %v1428 = vrot.slane %v1389, 4
    %v1429 = vsel %vm363, %v1421, %v1428
    %v1430 = vrot.slane %v1379, 4
    %v1431 = vsel %vm363, %v1428, %v1430
    %v1432 = vrot.slane %v1381, 4
    %v1433 = vsel %vm363, %v1430, %v1432
    %1434 = vrot.lane.b32.xlu0 %v1421, 64
    %v1435 = vpop.permute.xlu0 %1434
    %1436 = vrot.lane.b32.xlu0 %v1423, 64
    %v1437 = vpop.permute.xlu0 %1436
    %1438 = vrot.lane.b32.xlu0 %v1425, 64
    %v1439 = vpop.permute.xlu0 %1438
    %1440 = vrot.lane.b32.xlu0 %v1427, 64
    %v1441 = vpop.permute.xlu0 %1440
    %1442 = vrot.lane.b32.xlu0 %v1429, 64
    %v1443 = vpop.permute.xlu0 %1442
    %1444 = vrot.lane.b32.xlu0 %v1431, 64
    %v1445 = vpop.permute.xlu0 %1444
    %1446 = vrot.lane.b32.xlu0 %v1433, 64
    %v1447 = vpop.permute.xlu0 %1446
    %v1455 = vrot.slane 0.0, 6
    %v1456 = vrot.slane %v1388, 6
    %v1457 = vsel %vm416, %v1455, %v1456
    %v1458 = vrot.slane %v1374, 6
    %v1459 = vsel %vm416, %v1456, %v1458
    %v1460 = vrot.slane %v1376, 6
    %v1461 = vsel %vm416, %v1458, %v1460
    %v1462 = vrot.slane %v1389, 6
    %v1463 = vsel %vm416, %v1455, %v1462
    %v1464 = vrot.slane %v1379, 6
    %v1465 = vsel %vm416, %v1462, %v1464
    %v1466 = vrot.slane %v1381, 6
    %v1467 = vsel %vm416, %v1464, %v1466
    %1468 = vrot.lane.b32.xlu0 %v1455, 96
    %v1469 = vpop.permute.xlu0 %1468
    %1470 = vrot.lane.b32.xlu0 %v1457, 96
    %v1471 = vpop.permute.xlu0 %1470
    %1472 = vrot.lane.b32.xlu0 %v1459, 96
    %v1473 = vpop.permute.xlu0 %1472
    %1474 = vrot.lane.b32.xlu0 %v1461, 96
    %v1475 = vpop.permute.xlu0 %1474
    %1476 = vrot.lane.b32.xlu0 %v1463, 96
    %v1477 = vpop.permute.xlu0 %1476
    %1478 = vrot.lane.b32.xlu0 %v1465, 96
    %v1479 = vpop.permute.xlu0 %1478
    %1480 = vrot.lane.b32.xlu0 %v1467, 96
    %v1481 = vpop.permute.xlu0 %1480
    %v1489 = vrot.slane %v1376, 2
    %v1490 = vsel %vm297, %v1394, %v1489
    %v1491 = vrot.slane %v1381, 2
    %v1492 = vsel %vm297, %v1398, %v1491
    %1493 = vrot.lane.b32.xlu0 %v1392, 32
    %v1494 = vpop.permute.xlu0 %1493
    %1495 = vrot.lane.b32.xlu0 %v1490, 32
    %v1496 = vpop.permute.xlu0 %1495
    %1497 = vrot.lane.b32.xlu0 %v1489, 32
    %v1498 = vpop.permute.xlu0 %1497
    %1499 = vrot.lane.b32.xlu0 %v1396, 32
    %v1500 = vpop.permute.xlu0 %1499
    %1501 = vrot.lane.b32.xlu0 %v1492, 32
    %v1502 = vpop.permute.xlu0 %1501
    %1503 = vrot.lane.b32.xlu0 %v1491, 32
    %v1504 = vpop.permute.xlu0 %1503
    %v1511 = vrot.slane %v1375, 4
    %v1512 = vsel %vm363, %v1426, %v1511
    %v1513 = vrot.slane %v1380, 4
    %v1514 = vsel %vm363, %v1432, %v1513
    %1515 = vrot.lane.b32.xlu0 %v1422, 64
    %v1516 = vpop.permute.xlu0 %1515
    %1517 = vrot.lane.b32.xlu0 %v1512, 64
    %v1518 = vpop.permute.xlu0 %1517
    %1519 = vrot.lane.b32.xlu0 %v1428, 64
    %v1520 = vpop.permute.xlu0 %1519
    %1521 = vrot.lane.b32.xlu0 %v1514, 64
    %v1522 = vpop.permute.xlu0 %1521
    %v1527 = vrot.slane %v1375, 6
    %v1528 = vsel %vm416, %v1460, %v1527
    %v1529 = vrot.slane %v1380, 6
    %v1530 = vsel %vm416, %v1466, %v1529
    %1531 = vrot.lane.b32.xlu0 %v1456, 96
    %v1532 = vpop.permute.xlu0 %1531
    %1533 = vrot.lane.b32.xlu0 %v1528, 96
    %v1534 = vpop.permute.xlu0 %1533
    %1535 = vrot.lane.b32.xlu0 %v1462, 96
    %v1536 = vpop.permute.xlu0 %1535
    %1537 = vrot.lane.b32.xlu0 %v1530, 96
    %v1538 = vpop.permute.xlu0 %1537
    %v1543 = vsel %vm481, 0.0, %v1401
    %v1544 = vsel %vm481, 0.0, %v1403
    %v1545 = vsel %vm481, %v1388, %v1405
    %v1546 = vsel %vm481, %v1374, %v1407
    %v1547 = vsel %vm481, 0.0, %v1409
    %v1548 = vsel %vm481, %v1389, %v1411
    %v1549 = vsel %vm481, %v1379, %v1413
    %v1550 = vsel %vm488, %v1543, %v1435
    %v1551 = vsel %vm488, %v1544, %v1437
    %v1552 = vsel %vm488, %v1545, %v1439
    %v1553 = vsel %vm488, %v1546, %v1441
    %v1554 = vsel %vm488, %v1547, %v1443
    %v1555 = vsel %vm488, %v1548, %v1445
    %v1556 = vsel %vm488, %v1549, %v1447
    %v1557 = vsel %vm495, %v1550, %v1469
    %v1558 = vsel %vm495, %v1551, %v1471
    %v1559 = vsel %vm495, %v1552, %v1473
    %v1560 = vsel %vm495, %v1553, %v1475
    %v1561 = vsel %vm495, %v1554, %v1477
    %v1562 = vsel %vm495, %v1555, %v1479
    %v1563 = vsel %vm495, %v1556, %v1481
    %v1564 = vsel %vm481, 0.0, %v1494
    %v1565 = vsel %vm481, %v1374, %v1496
    %v1566 = vsel %vm481, %v1376, %v1498
    %v1567 = vsel %vm481, 0.0, %v1500
    %v1568 = vsel %vm481, %v1379, %v1502
    %v1569 = vsel %vm481, %v1381, %v1504
    %v1570 = vsel %vm488, %v1564, %v1516
    %v1571 = vsel %vm488, %v1565, %v1441
    %v1572 = vsel %vm488, %v1566, %v1518
    %v1573 = vsel %vm488, %v1567, %v1520
    %v1574 = vsel %vm488, %v1568, %v1447
    %v1575 = vsel %vm488, %v1569, %v1522
    %v1576 = vsel %vm495, %v1570, %v1532
    %v1577 = vsel %vm495, %v1571, %v1475
    %v1578 = vsel %vm495, %v1572, %v1534
    %v1579 = vsel %vm495, %v1573, %v1536
    %v1580 = vsel %vm495, %v1574, %v1481
    %v1581 = vsel %vm495, %v1575, %v1538
    %v1595 = vrot.slane %v1557, 6
    %v1596 = vrot.slane %v1558, 6
    %v1597 = vsel %vm416, %v1595, %v1596
    %v1598 = vrot.slane %v1576, 6
    %v1599 = vrot.slane %v1559, 6
    %v1600 = vsel %vm416, %v1598, %v1599
    %v1601 = vsel %vm416, %v1596, %v1599
    %v1602 = vrot.slane %v1577, 6
    %v1603 = vsel %vm416, %v1599, %v1602
    %v1604 = vrot.slane %v1560, 6
    %v1605 = vsel %vm416, %v1599, %v1604
    %v1606 = vrot.slane %v1578, 6
    %v1607 = vsel %vm416, %v1602, %v1606
    %v1608 = vrot.slane %v1561, 6
    %v1609 = vsel %vm416, %v1595, %v1608
    %v1610 = vrot.slane %v1579, 6
    %v1611 = vrot.slane %v1562, 6
    %v1612 = vsel %vm416, %v1610, %v1611
    %v1613 = vsel %vm416, %v1608, %v1611
    %v1614 = vrot.slane %v1580, 6
    %v1615 = vsel %vm416, %v1611, %v1614
    %v1616 = vrot.slane %v1563, 6
    %v1617 = vsel %vm416, %v1611, %v1616
    %v1618 = vrot.slane %v1581, 6
    %v1619 = vsel %vm416, %v1614, %v1618
    %v1632 = vld [vmem:[%s7 + $0x1] sm:$0x1]
    %s1633 = scalar_lea.vmem %s5, 256
    %v1634 = vld [vmem:[%s1633] sm:$0xff]
    %v1635 = vld [vmem:[%s1633 + $0x8] sm:$0xff]
    %v1636 = vld [vmem:[%s1633 + $0x10] sm:$0xff]
    %v1637 = vld [vmem:[%s1633 + $0x18] sm:$0xff]
    %v1638 = vld [vmem:[%s1633 + $0x20] sm:$0xff]
    %v1639 = vld [vmem:[%s1633 + $0x28] sm:$0xff]
    %v1640 = vld [vmem:[%s1633 + $0x30] sm:$0xff]
    %v1641 = vld [vmem:[%s1633 + $0x38] sm:$0xff]
    %v1642 = vld [vmem:[%s1633 + $0x40] sm:$0xff]
    %v1643 = vld [vmem:[%s1633 + $0x48] sm:$0xff]
    %v1644 = vld [vmem:[%s1633 + $0x50] sm:$0xff]
    %v1645 = vld [vmem:[%s1633 + $0x58] sm:$0xff]
    %v1646 = vld [vmem:[%s1633 + $0x60] sm:$0xff]
    %v1647 = vld [vmem:[%s1633 + $0x68] sm:$0xff]
    %v1648 = vld [vmem:[%s1633 + $0x70] sm:$0xff]
    %v1649 = vld [vmem:[%s1633 + $0x78] sm:$0xff]
    %v1650 = vld [vmem:[%s1633 + $0x80] sm:$0xff]
    %v1651 = vld [vmem:[%s1633 + $0x88] sm:$0xff]
    %v1652 = vld [vmem:[%s1633 + $0x90] sm:$0xff]
    %v1653 = vld [vmem:[%s1633 + $0x98] sm:$0xff]
    %v1654 = vld [vmem:[%s1633 + $0xa0] sm:$0xff]
    %v1655 = vld [vmem:[%s1633 + $0xa8] sm:$0xff]
    %v1656 = vld [vmem:[%s1633 + $0xb0] sm:$0xff]
    %v1657 = vld [vmem:[%s1633 + $0xb8] sm:$0xff]
    %v1658 = vld [vmem:[%s1633 + $0xc0] sm:$0xff]
    %v1659 = vld [vmem:[%s1633 + $0xc8] sm:$0xff]
    %v1660 = vld [vmem:[%s1633 + $0xd0] sm:$0xff]
    %v1661 = vld [vmem:[%s1633 + $0xd8] sm:$0xff]
    %v1662 = vld [vmem:[%s1633 + $0xe0] sm:$0xff]
    %v1663 = vld [vmem:[%s1633 + $0xe8] sm:$0xff]
    %v1664 = vld [vmem:[%s1633 + $0xf0] sm:$0xff]
    %v1665 = vld [vmem:[%s1633 + $0xf8] sm:$0xff]
    %v1666 = vlaneseq
    %v1667 = vshrl.u32 %v1666, 7
    %v1668 = vsub.s32 0, %v1667
    %v1669 = vrot.slane %v1632, %v1668
    %1670 = vmatprep.subr.mxu0 0.0
    %1671 = vmatpush1.msra.mxu0 %v1634
    %1672 = vmatprep.subr.mxu0 0.0
    %1673 = vmatpush1.msra.mxu0 %v1635
    %1674 = vmatprep.subr.mxu0 0.0
    %1675 = vmatpush1.msra.mxu0 %v1636
    %1676 = vmatprep.subr.mxu0 0.0
    %1677 = vmatpush1.msra.mxu0 %v1637
    %1678 = vmatprep.subr.mxu0 0.0
    %1679 = vmatpush1.msra.mxu0 %v1638
    %1680 = vmatprep.subr.mxu0 0.0
    %1681 = vmatpush1.msra.mxu0 %v1639
    %1682 = vmatprep.subr.mxu0 0.0
    %1683 = vmatpush1.msra.mxu0 %v1640
    %1684 = vmatprep.subr.mxu0 0.0
    %1685 = vmatpush1.msra.mxu0 %v1641
    %1686 = vmatprep.subr.mxu0 0.0
    %1687 = vmatpush1.msra.mxu0 %v1642
    %1688 = vmatprep.subr.mxu0 0.0
    %1689 = vmatpush1.msra.mxu0 %v1643
    %1690 = vmatprep.subr.mxu0 0.0
    %1691 = vmatpush1.msra.mxu0 %v1644
    %1692 = vmatprep.subr.mxu0 0.0
    %1693 = vmatpush1.msra.mxu0 %v1645
    %1694 = vmatprep.subr.mxu0 0.0
    %1695 = vmatpush1.msra.mxu0 %v1646
    %1696 = vmatprep.subr.mxu0 0.0
    %1697 = vmatpush1.msra.mxu0 %v1647
    %1698 = vmatprep.subr.mxu0 0.0
    %1699 = vmatpush1.msra.mxu0 %v1648
    %1700 = vmatprep.subr.mxu0 0.0
    %1701 = vmatpush1.msra.mxu0 %v1649
    %1702 = vmatprep.subr.mxu0 0.0
    %1703 = vmatpush1.msra.mxu0 %v1650
    %1704 = vmatprep.subr.mxu0 0.0
    %1705 = vmatpush1.msra.mxu0 %v1651
    %1706 = vmatprep.subr.mxu0 0.0
    %1707 = vmatpush1.msra.mxu0 %v1652
    %1708 = vmatprep.subr.mxu0 0.0
    %1709 = vmatpush1.msra.mxu0 %v1653
    %1710 = vmatprep.subr.mxu0 0.0
    %1711 = vmatpush1.msra.mxu0 %v1654
    %1712 = vmatprep.subr.mxu0 0.0
    %1713 = vmatpush1.msra.mxu0 %v1655
    %1714 = vmatprep.subr.mxu0 0.0
    %1715 = vmatpush1.msra.mxu0 %v1656
    %1716 = vmatprep.subr.mxu0 0.0
    %1717 = vmatpush1.msra.mxu0 %v1657
    %1718 = vmatprep.subr.mxu0 0.0
    %1719 = vmatpush1.msra.mxu0 %v1658
    %1720 = vmatprep.subr.mxu0 0.0
    %1721 = vmatpush1.msra.mxu0 %v1659
    %1722 = vmatprep.subr.mxu0 0.0
    %1723 = vmatpush1.msra.mxu0 %v1660
    %1724 = vmatprep.subr.mxu0 0.0
    %1725 = vmatpush1.msra.mxu0 %v1661
    %1726 = vmatprep.subr.mxu0 0.0
    %1727 = vmatpush1.msra.mxu0 %v1662
    %1728 = vmatprep.subr.mxu0 0.0
    %1729 = vmatpush1.msra.mxu0 %v1663
    %1730 = vmatprep.subr.mxu0 0.0
    %1731 = vmatpush1.msra.mxu0 %v1664
    %1732 = vmatprep.subr.mxu0 0.0
    %1733 = vmatpush1.msra.mxu0 %v1665
    %1734 = vmatprep.mubr.f32.mxu0 %v1600
    %1735 = vmatmul.mubr.f32.gmra.mrb[0].mxu0 %v1597
    %v1736 = vpop.f32.mrb[0].mxu0
    %v1737 = vadd.f32 %v1669, %v1736
    %v1738 = vpop.f32.mrb[0].mxu0
    %1739 = vmatprep.mubr.f32.mxu0 %v1603
    %1740 = vmatmul.mubr.f32.gmra.mrb[0].mxu0 %v1601
    %v1741 = vpop.f32.mrb[0].mxu0
    %v1742 = vadd.f32 %v1669, %v1741
    %v1743 = vpop.f32.mrb[0].mxu0
    %1744 = vmatprep.mubr.f32.mxu0 %v1607
    %1745 = vmatmul.mubr.f32.gmra.mrb[0].mxu0 %v1605
    %v1746 = vpop.f32.mrb[0].mxu0
    %v1747 = vadd.f32 %v1669, %v1746
    %v1748 = vpop.f32.mrb[0].mxu0
    %1749 = vmatprep.mubr.f32.mxu0 %v1612
    %1750 = vmatmul.mubr.f32.gmra.mrb[0].mxu0 %v1609
    %v1751 = vpop.f32.mrb[0].mxu0
    %v1752 = vadd.f32 %v1669, %v1751
    %v1753 = vpop.f32.mrb[0].mxu0
    %1754 = vmatprep.mubr.f32.mxu0 %v1615
    %1755 = vmatmul.mubr.f32.gmra.mrb[0].mxu0 %v1613
    %v1756 = vpop.f32.mrb[0].mxu0
    %v1757 = vadd.f32 %v1669, %v1756
    %v1758 = vpop.f32.mrb[0].mxu0
    %1759 = vmatprep.mubr.f32.mxu0 %v1619
    %1760 = vmatmul.mubr.f32.gmra.mrb[0].mxu0 %v1617
    %v1761 = vpop.f32.mrb[0].mxu0
    %v1762 = vadd.f32 %v1669, %v1761
    %v1763 = vpop.f32.mrb[0].mxu0
    %1764 = vdwg.mxu0
    %v1765 = vtanh.pop %v1737
    %v1766 = vtanh.pop %v1742
    %v1767 = vtanh.pop %v1747
    %v1768 = vtanh.pop %v1752
    %v1769 = vtanh.pop %v1757
    %v1770 = vtanh.pop %v1762
    %v1771 = vxor.u32 %v1737, 2147483648
    %v1772 = vxor.u32 %v1742, 2147483648
    %v1773 = vxor.u32 %v1747, 2147483648
    %v1774 = vxor.u32 %v1752, 2147483648
    %v1775 = vxor.u32 %v1757, 2147483648
    %v1776 = vxor.u32 %v1762, 2147483648
    %v1777 = vmul.f32 %v1771, 1.442695
    %v1778 = vpow.pop %v1777
    %v1779 = vmul.f32 %v1772, 1.442695
    %v1780 = vpow.pop %v1779
    %v1781 = vmul.f32 %v1773, 1.442695
    %v1782 = vpow.pop %v1781
    %v1783 = vmul.f32 %v1774, 1.442695
    %v1784 = vpow.pop %v1783
    %v1785 = vmul.f32 %v1775, 1.442695
    %v1786 = vpow.pop %v1785
    %v1787 = vmul.f32 %v1776, 1.442695
    %v1788 = vpow.pop %v1787
    %v1789 = vadd.f32 %v1778, 1.0
    %v1790 = vadd.f32 %v1780, 1.0
    %v1791 = vadd.f32 %v1782, 1.0
    %v1792 = vadd.f32 %v1784, 1.0
    %v1793 = vadd.f32 %v1786, 1.0
    %v1794 = vadd.f32 %v1788, 1.0
    %v1795 = vrcp.pop %v1789
    %v1796 = vmul.f32 1.0, %v1795
    %v1797 = vrcp.pop %v1790
    %v1798 = vmul.f32 1.0, %v1797
    %v1799 = vrcp.pop %v1791
    %v1800 = vmul.f32 1.0, %v1799
    %v1801 = vrcp.pop %v1792
    %v1802 = vmul.f32 1.0, %v1801
    %v1803 = vrcp.pop %v1793
    %v1804 = vmul.f32 1.0, %v1803
    %v1805 = vrcp.pop %v1794
    %v1806 = vmul.f32 1.0, %v1805
    %1813 = vrot.lane.b32.xlu0 %v1796, 96
    %v1814 = vpop.permute.xlu0 %1813
    %1815 = vrot.lane.b32.xlu0 %v1798, 96
    %v1816 = vpop.permute.xlu0 %1815
    %1817 = vrot.lane.b32.xlu0 %v1800, 96
    %v1818 = vpop.permute.xlu0 %1817
    %1819 = vrot.lane.b32.xlu0 %v1802, 96
    %v1820 = vpop.permute.xlu0 %1819
    %1821 = vrot.lane.b32.xlu0 %v1804, 96
    %v1822 = vpop.permute.xlu0 %1821
    %1823 = vrot.lane.b32.xlu0 %v1806, 96
    %v1824 = vpop.permute.xlu0 %1823
    %v1831 = vmul.f32 %v1765, %v1814
    %v1832 = vmul.f32 %v1766, %v1816
    %v1833 = vmul.f32 %v1767, %v1818
    %v1834 = vmul.f32 %v1768, %v1820
    %v1835 = vmul.f32 %v1769, %v1822
    %v1836 = vmul.f32 %v1770, %v1824
    %s1837 = scalar_lea.vmem %s6, 32
    %v1838 = vld [vmem:[%s1837] sm:$0xff]
    %v1839 = vld [vmem:[%s1837 + $0x8] sm:$0xff]
    %v1840 = vld [vmem:[%s1837 + $0x10] sm:$0xff]
    %v1841 = vld [vmem:[%s1837 + $0x18] sm:$0xff]
    %1843 = vrot.lane.b32.xlu0 %v1669, 64
    %v1844 = vpop.permute.xlu0 %1843
    %v1847 = vsel %vm481, %v1831, 0
    %v1850 = vsel %vm481, %v1832, 0
    %v1853 = vsel %vm481, %v1833, 0
    %v1856 = vsel %vm481, %v1834, 0
    %v1859 = vsel %vm481, %v1835, 0
    %v1862 = vsel %vm481, %v1836, 0
    %1864 = vmatprep.subr.mxu0 0.0
    %1865 = vmatpush1.msra.mxu0 %v1838
    %1866 = vmatprep.subr.mxu0 0.0
    %1867 = vmatpush1.msra.mxu0 %v1839
    %1868 = vmatprep.subr.mxu0 0.0
    %1869 = vmatpush1.msra.mxu0 %v1840
    %1870 = vmatprep.subr.mxu0 0.0
    %1871 = vmatpush1.msra.mxu0 %v1841
    %1872 = vmatprep.subr.mxu0 0.0
    %1873 = vmatpush1.msra.mxu0 0.0
    %1874 = vmatprep.subr.mxu0 0.0
    %1875 = vmatpush1.msra.mxu0 0.0
    %1876 = vmatprep.subr.mxu0 0.0
    %1877 = vmatpush1.msra.mxu0 0.0
    %1878 = vmatprep.subr.mxu0 0.0
    %1879 = vmatpush1.msra.mxu0 0.0
    %1880 = vmatprep.subr.mxu0 0.0
    %1881 = vmatpush1.msra.mxu0 0.0
    %1882 = vmatprep.subr.mxu0 0.0
    %1883 = vmatpush1.msra.mxu0 0.0
    %1884 = vmatprep.subr.mxu0 0.0
    %1885 = vmatpush1.msra.mxu0 0.0
    %1886 = vmatprep.subr.mxu0 0.0
    %1887 = vmatpush1.msra.mxu0 0.0
    %1888 = vmatprep.subr.mxu0 0.0
    %1889 = vmatpush1.msra.mxu0 0.0
    %1890 = vmatprep.subr.mxu0 0.0
    %1891 = vmatpush1.msra.mxu0 0.0
    %1892 = vmatprep.subr.mxu0 0.0
    %1893 = vmatpush1.msra.mxu0 0.0
    %1894 = vmatprep.subr.mxu0 0.0
    %1895 = vmatpush1.msra.mxu0 0.0
    %1896 = vmatprep.subr.mxu0 0.0
    %1897 = vmatpush1.msra.mxu0 0.0
    %1898 = vmatprep.subr.mxu0 0.0
    %1899 = vmatpush1.msra.mxu0 0.0
    %1900 = vmatprep.subr.mxu0 0.0
    %1901 = vmatpush1.msra.mxu0 0.0
    %1902 = vmatprep.subr.mxu0 0.0
    %1903 = vmatpush1.msra.mxu0 0.0
    %1904 = vmatprep.subr.mxu0 0.0
    %1905 = vmatpush1.msra.mxu0 0.0
    %1906 = vmatprep.subr.mxu0 0.0
    %1907 = vmatpush1.msra.mxu0 0.0
    %1908 = vmatprep.subr.mxu0 0.0
    %1909 = vmatpush1.msra.mxu0 0.0
    %1910 = vmatprep.subr.mxu0 0.0
    %1911 = vmatpush1.msra.mxu0 0.0
    %1912 = vmatprep.subr.mxu0 0.0
    %1913 = vmatpush1.msra.mxu0 0.0
    %1914 = vmatprep.subr.mxu0 0.0
    %1915 = vmatpush1.msra.mxu0 0.0
    %1916 = vmatprep.subr.mxu0 0.0
    %1917 = vmatpush1.msra.mxu0 0.0
    %1918 = vmatprep.subr.mxu0 0.0
    %1919 = vmatpush1.msra.mxu0 0.0
    %1920 = vmatprep.subr.mxu0 0.0
    %1921 = vmatpush1.msra.mxu0 0.0
    %1922 = vmatprep.subr.mxu0 0.0
    %1923 = vmatpush1.msra.mxu0 0.0
    %1924 = vmatprep.subr.mxu0 0.0
    %1925 = vmatpush1.msra.mxu0 0.0
    %1926 = vmatprep.subr.mxu0 0.0
    %1927 = vmatpush1.msra.mxu0 0.0
    %1928 = vmatprep.mubr.f32.mxu0 0.0
    %1929 = vmatmul.mubr.f32.gmra.mrb[0].mxu0 %v1847
    %v1930 = vpop.f32.mrb[0].mxu0
    %v1931 = vadd.f32 %v1844, %v1930
    %v1932 = vpop.f32.mrb[0].mxu0
    %1933 = vmatprep.mubr.f32.mxu0 0.0
    %1934 = vmatmul.mubr.f32.gmra.mrb[0].mxu0 %v1850
    %v1935 = vpop.f32.mrb[0].mxu0
    %v1936 = vadd.f32 %v1844, %v1935
    %v1937 = vpop.f32.mrb[0].mxu0
    %1938 = vmatprep.mubr.f32.mxu0 0.0
    %1939 = vmatmul.mubr.f32.gmra.mrb[0].mxu0 %v1853
    %v1940 = vpop.f32.mrb[0].mxu0
    %v1941 = vadd.f32 %v1844, %v1940
    %v1942 = vpop.f32.mrb[0].mxu0
    %1943 = vmatprep.mubr.f32.mxu0 0.0
    %1944 = vmatmul.mubr.f32.gmra.mrb[0].mxu0 %v1856
    %v1945 = vpop.f32.mrb[0].mxu0
    %v1946 = vadd.f32 %v1844, %v1945
    %v1947 = vpop.f32.mrb[0].mxu0
    %1948 = vmatprep.mubr.f32.mxu0 0.0
    %1949 = vmatmul.mubr.f32.gmra.mrb[0].mxu0 %v1859
    %v1950 = vpop.f32.mrb[0].mxu0
    %v1951 = vadd.f32 %v1844, %v1950
    %v1952 = vpop.f32.mrb[0].mxu0
    %1953 = vmatprep.mubr.f32.mxu0 0.0
    %1954 = vmatmul.mubr.f32.gmra.mrb[0].mxu0 %v1862
    %v1955 = vpop.f32.mrb[0].mxu0
    %v1956 = vadd.f32 %v1844, %v1955
    %v1957 = vpop.f32.mrb[0].mxu0
    %1958 = vdwg.mxu0
    %v1959 = vadd.f32 %v1931, %v1360
    %v1960 = vadd.f32 %v1936, %v1361
    %v1961 = vadd.f32 %v1941, %v1362
    %v1962 = vadd.f32 %v1946, %v1363
    %v1963 = vadd.f32 %v1951, %v1364
    %v1964 = vadd.f32 %v1956, %v1365
    %v1965 = vadd.f32 %v1360, %v1959
    %v1966 = vadd.f32 %v1361, %v1960
    %v1967 = vadd.f32 %v1362, %v1961
    %v1968 = vadd.f32 %v1363, %v1962
    %v1969 = vadd.f32 %v1364, %v1963
    %v1970 = vadd.f32 %v1365, %v1964
    %v1977 = vrot.slane %v1959, 4
    %v1978 = vrot.slane %v1960, 4
    %v1979 = vsel %vm363, %v1977, %v1978
    %v1980 = vrot.slane %v1961, 4
    %v1981 = vsel %vm363, %v1978, %v1980
    %v1982 = vrot.slane %v1962, 4
    %v1983 = vrot.slane %v1963, 4
    %v1984 = vsel %vm363, %v1982, %v1983
    %v1985 = vrot.slane %v1964, 4
    %v1986 = vsel %vm363, %v1983, %v1985
    %v1991 = vsel %vm363, 0.0, %v1977
    %v1992 = vsel %vm363, 0.0, %v1982
    %v1995 = vsel %vm363, %v1421, %v1421
    %v1996 = vrot.slane %v1991, 4
    %v1997 = vsel %vm363, %v1421, %v1996
    %v1998 = vrot.slane %v1992, 4
    %v1999 = vsel %vm363, %v1421, %v1998
    %2000 = vrot.lane.b32.xlu0 %v1995, 32
    %v2001 = vpop.permute.xlu0 %2000
    %2002 = vrot.lane.b32.xlu0 %v1997, 32
    %v2003 = vpop.permute.xlu0 %2002
    %2004 = vrot.lane.b32.xlu0 %v1999, 32
    %v2005 = vpop.permute.xlu0 %2004
    %2009 = vrot.lane.b32.xlu0 0.0, 64
    %v2010 = vpop.permute.xlu0 %2009
    %2011 = vrot.lane.b32.xlu0 %v1991, 64
    %v2012 = vpop.permute.xlu0 %2011
    %2013 = vrot.lane.b32.xlu0 %v1992, 64
    %v2014 = vpop.permute.xlu0 %2013
    %v2018 = vrot.slane %v1979, 4
    %v2019 = vsel %vm363, %v1996, %v2018
    %v2020 = vrot.slane %v1984, 4
    %v2021 = vsel %vm363, %v1998, %v2020
    %2022 = vrot.lane.b32.xlu0 %v1995, 96
    %v2023 = vpop.permute.xlu0 %2022
    %2024 = vrot.lane.b32.xlu0 %v1997, 96
    %v2025 = vpop.permute.xlu0 %2024
    %2026 = vrot.lane.b32.xlu0 %v2019, 96
    %v2027 = vpop.permute.xlu0 %2026
    %2028 = vrot.lane.b32.xlu0 %v1999, 96
    %v2029 = vpop.permute.xlu0 %2028
    %2030 = vrot.lane.b32.xlu0 %v2021, 96
    %v2031 = vpop.permute.xlu0 %2030
    %v2037 = vrot.slane %v1981, 4
    %v2038 = vsel %vm363, %v2018, %v2037
    %v2039 = vrot.slane %v1986, 4
    %v2040 = vsel %vm363, %v2020, %v2039
    %2041 = vrot.lane.b32.xlu0 %v2019, 32
    %v2042 = vpop.permute.xlu0 %2041
    %2043 = vrot.lane.b32.xlu0 %v2038, 32
    %v2044 = vpop.permute.xlu0 %2043
    %2045 = vrot.lane.b32.xlu0 %v2021, 32
    %v2046 = vpop.permute.xlu0 %2045
    %2047 = vrot.lane.b32.xlu0 %v2040, 32
    %v2048 = vpop.permute.xlu0 %2047
    %2053 = vrot.lane.b32.xlu0 %v1979, 64
    %v2054 = vpop.permute.xlu0 %2053
    %2055 = vrot.lane.b32.xlu0 %v1981, 64
    %v2056 = vpop.permute.xlu0 %2055
    %2057 = vrot.lane.b32.xlu0 %v1984, 64
    %v2058 = vpop.permute.xlu0 %2057
    %2059 = vrot.lane.b32.xlu0 %v1986, 64
    %v2060 = vpop.permute.xlu0 %2059
    %v2065 = vrot.slane %v1980, 4
    %v2066 = vsel %vm363, %v2037, %v2065
    %v2067 = vrot.slane %v1985, 4
    %v2068 = vsel %vm363, %v2039, %v2067
    %2069 = vrot.lane.b32.xlu0 %v2038, 96
    %v2070 = vpop.permute.xlu0 %2069
    %2071 = vrot.lane.b32.xlu0 %v2066, 96
    %v2072 = vpop.permute.xlu0 %2071
    %2073 = vrot.lane.b32.xlu0 %v2040, 96
    %v2074 = vpop.permute.xlu0 %2073
    %2075 = vrot.lane.b32.xlu0 %v2068, 96
    %v2076 = vpop.permute.xlu0 %2075
    %v2081 = vsel %vm481, 0.0, %v2001
    %v2082 = vsel %vm481, 0.0, %v2003
    %v2083 = vsel %vm481, 0.0, %v2005
    %v2084 = vsel %vm488, %v2081, %v2010
    %v2085 = vsel %vm488, %v2082, %v2012
    %v2086 = vsel %vm488, %v2083, %v2014
    %v2087 = vsel %vm495, %v2084, %v2023
    %v2088 = vsel %vm495, %v2084, %v2025
    %v2089 = vsel %vm495, %v2085, %v2027
    %v2090 = vsel %vm495, %v2084, %v2029
    %v2091 = vsel %vm495, %v2086, %v2031
    %v2092 = vsel %vm481, %v1991, %v2042
    %v2093 = vsel %vm481, %v1979, %v2044
    %v2094 = vsel %vm481, %v1992, %v2046
    %v2095 = vsel %vm481, %v1984, %v2048
    %v2096 = vsel %vm488, %v2092, %v2054
    %v2097 = vsel %vm488, %v2093, %v2056
    %v2098 = vsel %vm488, %v2094, %v2058
    %v2099 = vsel %vm488, %v2095, %v2060
    %v2100 = vsel %vm495, %v2096, %v2070
    %v2101 = vsel %vm495, %v2097, %v2072
    %v2102 = vsel %vm495, %v2098, %v2074
    %v2103 = vsel %vm495, %v2099, %v2076
    %v2104 = vld [vmem:[%s7 + $0x2] sm:$0x1]
    %s2105 = scalar_lea.vmem %s5, 512
    %v2106 = vld [vmem:[%s2105] sm:$0xff]
    %v2107 = vld [vmem:[%s2105 + $0x8] sm:$0xff]
    %v2108 = vld [vmem:[%s2105 + $0x10] sm:$0xff]
    %v2109 = vld [vmem:[%s2105 + $0x18] sm:$0xff]
    %v2110 = vld [vmem:[%s2105 + $0x20] sm:$0xff]
    %v2111 = vld [vmem:[%s2105 + $0x28] sm:$0xff]
    %v2112 = vld [vmem:[%s2105 + $0x30] sm:$0xff]
    %v2113 = vld [vmem:[%s2105 + $0x38] sm:$0xff]
    %v2114 = vld [vmem:[%s2105 + $0x40] sm:$0xff]
    %v2115 = vld [vmem:[%s2105 + $0x48] sm:$0xff]
    %v2116 = vld [vmem:[%s2105 + $0x50] sm:$0xff]
    %v2117 = vld [vmem:[%s2105 + $0x58] sm:$0xff]
    %v2118 = vld [vmem:[%s2105 + $0x60] sm:$0xff]
    %v2119 = vld [vmem:[%s2105 + $0x68] sm:$0xff]
    %v2120 = vld [vmem:[%s2105 + $0x70] sm:$0xff]
    %v2121 = vld [vmem:[%s2105 + $0x78] sm:$0xff]
    %v2122 = vld [vmem:[%s2105 + $0x80] sm:$0xff]
    %v2123 = vld [vmem:[%s2105 + $0x88] sm:$0xff]
    %v2124 = vld [vmem:[%s2105 + $0x90] sm:$0xff]
    %v2125 = vld [vmem:[%s2105 + $0x98] sm:$0xff]
    %v2126 = vld [vmem:[%s2105 + $0xa0] sm:$0xff]
    %v2127 = vld [vmem:[%s2105 + $0xa8] sm:$0xff]
    %v2128 = vld [vmem:[%s2105 + $0xb0] sm:$0xff]
    %v2129 = vld [vmem:[%s2105 + $0xb8] sm:$0xff]
    %v2130 = vld [vmem:[%s2105 + $0xc0] sm:$0xff]
    %v2131 = vld [vmem:[%s2105 + $0xc8] sm:$0xff]
    %v2132 = vld [vmem:[%s2105 + $0xd0] sm:$0xff]
    %v2133 = vld [vmem:[%s2105 + $0xd8] sm:$0xff]
    %v2134 = vld [vmem:[%s2105 + $0xe0] sm:$0xff]
    %v2135 = vld [vmem:[%s2105 + $0xe8] sm:$0xff]
    %v2136 = vld [vmem:[%s2105 + $0xf0] sm:$0xff]
    %v2137 = vld [vmem:[%s2105 + $0xf8] sm:$0xff]
    %v2138 = vlaneseq
    %v2139 = vshrl.u32 %v2138, 7
    %v2140 = vsub.s32 0, %v2139
    %v2141 = vrot.slane %v2104, %v2140
    %2142 = vmatprep.subr.mxu0 0.0
    %2143 = vmatpush1.msra.mxu0 %v2106
    %2144 = vmatprep.subr.mxu0 0.0
    %2145 = vmatpush1.msra.mxu0 %v2107
    %2146 = vmatprep.subr.mxu0 0.0
    %2147 = vmatpush1.msra.mxu0 %v2108
    %2148 = vmatprep.subr.mxu0 0.0
    %2149 = vmatpush1.msra.mxu0 %v2109
    %2150 = vmatprep.subr.mxu0 0.0
    %2151 = vmatpush1.msra.mxu0 %v2110
    %2152 = vmatprep.subr.mxu0 0.0
    %2153 = vmatpush1.msra.mxu0 %v2111
    %2154 = vmatprep.subr.mxu0 0.0
    %2155 = vmatpush1.msra.mxu0 %v2112
    %2156 = vmatprep.subr.mxu0 0.0
    %2157 = vmatpush1.msra.mxu0 %v2113
    %2158 = vmatprep.subr.mxu0 0.0
    %2159 = vmatpush1.msra.mxu0 %v2114
    %2160 = vmatprep.subr.mxu0 0.0
    %2161 = vmatpush1.msra.mxu0 %v2115
    %2162 = vmatprep.subr.mxu0 0.0
    %2163 = vmatpush1.msra.mxu0 %v2116
    %2164 = vmatprep.subr.mxu0 0.0
    %2165 = vmatpush1.msra.mxu0 %v2117
    %2166 = vmatprep.subr.mxu0 0.0
    %2167 = vmatpush1.msra.mxu0 %v2118
    %2168 = vmatprep.subr.mxu0 0.0
    %2169 = vmatpush1.msra.mxu0 %v2119
    %2170 = vmatprep.subr.mxu0 0.0
    %2171 = vmatpush1.msra.mxu0 %v2120
    %2172 = vmatprep.subr.mxu0 0.0
    %2173 = vmatpush1.msra.mxu0 %v2121
    %2174 = vmatprep.subr.mxu0 0.0
    %2175 = vmatpush1.msra.mxu0 %v2122
    %2176 = vmatprep.subr.mxu0 0.0
    %2177 = vmatpush1.msra.mxu0 %v2123
    %2178 = vmatprep.subr.mxu0 0.0
    %2179 = vmatpush1.msra.mxu0 %v2124
    %2180 = vmatprep.subr.mxu0 0.0
    %2181 = vmatpush1.msra.mxu0 %v2125
    %2182 = vmatprep.subr.mxu0 0.0
    %2183 = vmatpush1.msra.mxu0 %v2126
    %2184 = vmatprep.subr.mxu0 0.0
    %2185 = vmatpush1.msra.mxu0 %v2127
    %2186 = vmatprep.subr.mxu0 0.0
    %2187 = vmatpush1.msra.mxu0 %v2128
    %2188 = vmatprep.subr.mxu0 0.0
    %2189 = vmatpush1.msra.mxu0 %v2129
    %2190 = vmatprep.subr.mxu0 0.0
    %2191 = vmatpush1.msra.mxu0 %v2130
    %2192 = vmatprep.subr.mxu0 0.0
    %2193 = vmatpush1.msra.mxu0 %v2131
    %2194 = vmatprep.subr.mxu0 0.0
    %2195 = vmatpush1.msra.mxu0 %v2132
    %2196 = vmatprep.subr.mxu0 0.0
    %2197 = vmatpush1.msra.mxu0 %v2133
    %2198 = vmatprep.subr.mxu0 0.0
    %2199 = vmatpush1.msra.mxu0 %v2134
    %2200 = vmatprep.subr.mxu0 0.0
    %2201 = vmatpush1.msra.mxu0 %v2135
    %2202 = vmatprep.subr.mxu0 0.0
    %2203 = vmatpush1.msra.mxu0 %v2136
    %2204 = vmatprep.subr.mxu0 0.0
    %2205 = vmatpush1.msra.mxu0 %v2137
    %2206 = vmatprep.mubr.f32.mxu0 %v2089
    %2207 = vmatmul.mubr.f32.gmra.mrb[0].mxu0 %v2087
    %v2208 = vpop.f32.mrb[0].mxu0
    %v2209 = vadd.f32 %v2141, %v2208
    %v2210 = vpop.f32.mrb[0].mxu0
    %2211 = vmatprep.mubr.f32.mxu0 %v2100
    %2212 = vmatmul.mubr.f32.gmra.mrb[0].mxu0 %v2088
    %v2213 = vpop.f32.mrb[0].mxu0
    %v2214 = vadd.f32 %v2141, %v2213
    %v2215 = vpop.f32.mrb[0].mxu0
    %2216 = vmatprep.mubr.f32.mxu0 %v2101
    %2217 = vmatmul.mubr.f32.gmra.mrb[0].mxu0 %v2089
    %v2218 = vpop.f32.mrb[0].mxu0
    %v2219 = vadd.f32 %v2141, %v2218
    %v2220 = vpop.f32.mrb[0].mxu0
    %2221 = vmatprep.mubr.f32.mxu0 %v2091
    %2222 = vmatmul.mubr.f32.gmra.mrb[0].mxu0 %v2087
    %v2223 = vpop.f32.mrb[0].mxu0
    %v2224 = vadd.f32 %v2141, %v2223
    %v2225 = vpop.f32.mrb[0].mxu0
    %2226 = vmatprep.mubr.f32.mxu0 %v2102
    %2227 = vmatmul.mubr.f32.gmra.mrb[0].mxu0 %v2090
    %v2228 = vpop.f32.mrb[0].mxu0
    %v2229 = vadd.f32 %v2141, %v2228
    %v2230 = vpop.f32.mrb[0].mxu0
    %2231 = vmatprep.mubr.f32.mxu0 %v2103
    %2232 = vmatmul.mubr.f32.gmra.mrb[0].mxu0 %v2091
    %v2233 = vpop.f32.mrb[0].mxu0
    %v2234 = vadd.f32 %v2141, %v2233
    %v2235 = vpop.f32.mrb[0].mxu0
    %2236 = vdwg.mxu0
    %v2237 = vtanh.pop %v2209
    %v2238 = vtanh.pop %v2214
    %v2239 = vtanh.pop %v2219
    %v2240 = vtanh.pop %v2224
    %v2241 = vtanh.pop %v2229
    %v2242 = vtanh.pop %v2234
    %v2243 = vxor.u32 %v2209, 2147483648
    %v2244 = vxor.u32 %v2214, 2147483648
    %v2245 = vxor.u32 %v2219, 2147483648
    %v2246 = vxor.u32 %v2224, 2147483648
    %v2247 = vxor.u32 %v2229, 2147483648
    %v2248 = vxor.u32 %v2234, 2147483648
    %v2249 = vmul.f32 %v2243, 1.442695
    %v2250 = vpow.pop %v2249
    %v2251 = vmul.f32 %v2244, 1.442695
    %v2252 = vpow.pop %v2251
    %v2253 = vmul.f32 %v2245, 1.442695
    %v2254 = vpow.pop %v2253
    %v2255 = vmul.f32 %v2246, 1.442695
    %v2256 = vpow.pop %v2255
    %v2257 = vmul.f32 %v2247, 1.442695
    %v2258 = vpow.pop %v2257
    %v2259 = vmul.f32 %v2248, 1.442695
    %v2260 = vpow.pop %v2259
    %v2261 = vadd.f32 %v2250, 1.0
    %v2262 = vadd.f32 %v2252, 1.0
    %v2263 = vadd.f32 %v2254, 1.0
    %v2264 = vadd.f32 %v2256, 1.0
    %v2265 = vadd.f32 %v2258, 1.0
    %v2266 = vadd.f32 %v2260, 1.0
    %v2267 = vrcp.pop %v2261
    %v2268 = vmul.f32 1.0, %v2267
    %v2269 = vrcp.pop %v2262
    %v2270 = vmul.f32 1.0, %v2269
    %v2271 = vrcp.pop %v2263
    %v2272 = vmul.f32 1.0, %v2271
    %v2273 = vrcp.pop %v2264
    %v2274 = vmul.f32 1.0, %v2273
    %v2275 = vrcp.pop %v2265
    %v2276 = vmul.f32 1.0, %v2275
    %v2277 = vrcp.pop %v2266
    %v2278 = vmul.f32 1.0, %v2277
    %2285 = vrot.lane.b32.xlu0 %v2268, 96
    %v2286 = vpop.permute.xlu0 %2285
    %2287 = vrot.lane.b32.xlu0 %v2270, 96
    %v2288 = vpop.permute.xlu0 %2287
    %2289 = vrot.lane.b32.xlu0 %v2272, 96
    %v2290 = vpop.permute.xlu0 %2289
    %2291 = vrot.lane.b32.xlu0 %v2274, 96
    %v2292 = vpop.permute.xlu0 %2291
    %2293 = vrot.lane.b32.xlu0 %v2276, 96
    %v2294 = vpop.permute.xlu0 %2293
    %2295 = vrot.lane.b32.xlu0 %v2278, 96
    %v2296 = vpop.permute.xlu0 %2295
    %v2303 = vmul.f32 %v2237, %v2286
    %v2304 = vmul.f32 %v2238, %v2288
    %v2305 = vmul.f32 %v2239, %v2290
    %v2306 = vmul.f32 %v2240, %v2292
    %v2307 = vmul.f32 %v2241, %v2294
    %v2308 = vmul.f32 %v2242, %v2296
    %s2309 = scalar_lea.vmem %s6, 64
    %v2310 = vld [vmem:[%s2309] sm:$0xff]
    %v2311 = vld [vmem:[%s2309 + $0x8] sm:$0xff]
    %v2312 = vld [vmem:[%s2309 + $0x10] sm:$0xff]
    %v2313 = vld [vmem:[%s2309 + $0x18] sm:$0xff]
    %2315 = vrot.lane.b32.xlu0 %v2141, 64
    %v2316 = vpop.permute.xlu0 %2315
    %v2319 = vsel %vm481, %v2303, 0
    %v2322 = vsel %vm481, %v2304, 0
    %v2325 = vsel %vm481, %v2305, 0
    %v2328 = vsel %vm481, %v2306, 0
    %v2331 = vsel %vm481, %v2307, 0
    %v2334 = vsel %vm481, %v2308, 0
    %2336 = vmatprep.subr.mxu0 0.0
    %2337 = vmatpush1.msra.mxu0 %v2310
    %2338 = vmatprep.subr.mxu0 0.0
    %2339 = vmatpush1.msra.mxu0 %v2311
    %2340 = vmatprep.subr.mxu0 0.0
    %2341 = vmatpush1.msra.mxu0 %v2312
    %2342 = vmatprep.subr.mxu0 0.0
    %2343 = vmatpush1.msra.mxu0 %v2313
    %2344 = vmatprep.subr.mxu0 0.0
    %2345 = vmatpush1.msra.mxu0 0.0
    %2346 = vmatprep.subr.mxu0 0.0
    %2347 = vmatpush1.msra.mxu0 0.0
    %2348 = vmatprep.subr.mxu0 0.0
    %2349 = vmatpush1.msra.mxu0 0.0
    %2350 = vmatprep.subr.mxu0 0.0
    %2351 = vmatpush1.msra.mxu0 0.0
    %2352 = vmatprep.subr.mxu0 0.0
    %2353 = vmatpush1.msra.mxu0 0.0
    %2354 = vmatprep.subr.mxu0 0.0
    %2355 = vmatpush1.msra.mxu0 0.0
    %2356 = vmatprep.subr.mxu0 0.0
    %2357 = vmatpush1.msra.mxu0 0.0
    %2358 = vmatprep.subr.mxu0 0.0
    %2359 = vmatpush1.msra.mxu0 0.0
    %2360 = vmatprep.subr.mxu0 0.0
    %2361 = vmatpush1.msra.mxu0 0.0
    %2362 = vmatprep.subr.mxu0 0.0
    %2363 = vmatpush1.msra.mxu0 0.0
    %2364 = vmatprep.subr.mxu0 0.0
    %2365 = vmatpush1.msra.mxu0 0.0
    %2366 = vmatprep.subr.mxu0 0.0
    %2367 = vmatpush1.msra.mxu0 0.0
    %2368 = vmatprep.subr.mxu0 0.0
    %2369 = vmatpush1.msra.mxu0 0.0
    %2370 = vmatprep.subr.mxu0 0.0
    %2371 = vmatpush1.msra.mxu0 0.0
    %2372 = vmatprep.subr.mxu0 0.0
    %2373 = vmatpush1.msra.mxu0 0.0
    %2374 = vmatprep.subr.mxu0 0.0
    %2375 = vmatpush1.msra.mxu0 0.0
    %2376 = vmatprep.subr.mxu0 0.0
    %2377 = vmatpush1.msra.mxu0 0.0
    %2378 = vmatprep.subr.mxu0 0.0
    %2379 = vmatpush1.msra.mxu0 0.0
    %2380 = vmatprep.subr.mxu0 0.0
    %2381 = vmatpush1.msra.mxu0 0.0
    %2382 = vmatprep.subr.mxu0 0.0
    %2383 = vmatpush1.msra.mxu0 0.0
    %2384 = vmatprep.subr.mxu0 0.0
    %2385 = vmatpush1.msra.mxu0 0.0
    %2386 = vmatprep.subr.mxu0 0.0
    %2387 = vmatpush1.msra.mxu0 0.0
    %2388 = vmatprep.subr.mxu0 0.0
    %2389 = vmatpush1.msra.mxu0 0.0
    %2390 = vmatprep.subr.mxu0 0.0
    %2391 = vmatpush1.msra.mxu0 0.0
    %2392 = vmatprep.subr.mxu0 0.0
    %2393 = vmatpush1.msra.mxu0 0.0
    %2394 = vmatprep.subr.mxu0 0.0
    %2395 = vmatpush1.msra.mxu0 0.0
    %2396 = vmatprep.subr.mxu0 0.0
    %2397 = vmatpush1.msra.mxu0 0.0
    %2398 = vmatprep.subr.mxu0 0.0
    %2399 = vmatpush1.msra.mxu0 0.0
    %2400 = vmatprep.mubr.f32.mxu0 0.0
    %2401 = vmatmul.mubr.f32.gmra.mrb[0].mxu0 %v2319
    %v2402 = vpop.f32.mrb[0].mxu0
    %v2403 = vadd.f32 %v2316, %v2402
    %v2404 = vpop.f32.mrb[0].mxu0
    %2405 = vmatprep.mubr.f32.mxu0 0.0
    %2406 = vmatmul.mubr.f32.gmra.mrb[0].mxu0 %v2322
    %v2407 = vpop.f32.mrb[0].mxu0
    %v2408 = vadd.f32 %v2316, %v2407
    %v2409 = vpop.f32.mrb[0].mxu0
    %2410 = vmatprep.mubr.f32.mxu0 0.0
    %2411 = vmatmul.mubr.f32.gmra.mrb[0].mxu0 %v2325
    %v2412 = vpop.f32.mrb[0].mxu0
    %v2413 = vadd.f32 %v2316, %v2412
    %v2414 = vpop.f32.mrb[0].mxu0
    %2415 = vmatprep.mubr.f32.mxu0 0.0
    %2416 = vmatmul.mubr.f32.gmra.mrb[0].mxu0 %v2328
    %v2417 = vpop.f32.mrb[0].mxu0
    %v2418 = vadd.f32 %v2316, %v2417
    %v2419 = vpop.f32.mrb[0].mxu0
    %2420 = vmatprep.mubr.f32.mxu0 0.0
    %2421 = vmatmul.mubr.f32.gmra.mrb[0].mxu0 %v2331
    %v2422 = vpop.f32.mrb[0].mxu0
    %v2423 = vadd.f32 %v2316, %v2422
    %v2424 = vpop.f32.mrb[0].mxu0
    %2425 = vmatprep.mubr.f32.mxu0 0.0
    %2426 = vmatmul.mubr.f32.gmra.mrb[0].mxu0 %v2334
    %v2427 = vpop.f32.mrb[0].mxu0
    %v2428 = vadd.f32 %v2316, %v2427
    %v2429 = vpop.f32.mrb[0].mxu0
    %2430 = vdwg.mxu0
    %v2431 = vadd.f32 %v2403, %v1959
    %v2432 = vadd.f32 %v2408, %v1960
    %v2433 = vadd.f32 %v2413, %v1961
    %v2434 = vadd.f32 %v2418, %v1962
    %v2435 = vadd.f32 %v2423, %v1963
    %v2436 = vadd.f32 %v2428, %v1964
    %v2437 = vadd.f32 %v1965, %v2431
    %v2438 = vadd.f32 %v1966, %v2432
    %v2439 = vadd.f32 %v1967, %v2433
    %v2440 = vadd.f32 %v1968, %v2434
    %v2441 = vadd.f32 %v1969, %v2435
    %v2442 = vadd.f32 %v1970, %v2436
    %v2443 = vlaneseq
    %v2444 = vshrl.u32 %v2443, 7
    %v2445 = vadd.s32 %v2444, 8
    %v2446 = vadd.s32 %v2444, 16
    %vm2447 = vcmp.lt.s32.totalorder %v2444, 18
    %vm2448 = vcmp.lt.s32.totalorder %v2445, 18
    %vm2449 = vcmp.lt.s32.totalorder %v2446, 18
    %v2450 = vsel %vm2447, %v2437, 0.0
    %v2451 = vsel %vm2448, %v2438, 0.0
    %v2452 = vsel %vm2449, %v2439, 0.0
    %v2453 = vsel %vm2447, %v2440, 0.0
    %v2454 = vsel %vm2448, %v2441, 0.0
    %v2455 = vsel %vm2449, %v2442, 0.0
    %v2456 = vsel %vm481, %v2450, 0.0
    %v2457 = vsel %vm481, %v2451, 0.0
    %v2458 = vadd.f32 %v2456, %v2457
    %v2459 = vsel %vm481, %v2452, 0.0
    %v2460 = vadd.f32 %v2458, %v2459
    %v2461 = vrot.slane %v2460, 4
    %v2462 = vadd.f32 %v2460, %v2461
    %v2463 = vrot.slane %v2462, 2
    %v2464 = vadd.f32 %v2462, %v2463
    %v2465 = vrot.slane %v2464, 1
    %v2466 = vadd.f32 %v2464, %v2465
    %v2467 = vsel %vm481, %v2453, 0.0
    %v2468 = vsel %vm481, %v2454, 0.0
    %v2469 = vadd.f32 %v2467, %v2468
    %v2470 = vsel %vm481, %v2455, 0.0
    %v2471 = vadd.f32 %v2469, %v2470
    %v2472 = vrot.slane %v2471, 4
    %v2473 = vadd.f32 %v2471, %v2472
    %v2474 = vrot.slane %v2473, 2
    %v2475 = vadd.f32 %v2473, %v2474
    %v2476 = vrot.slane %v2475, 1
    %v2477 = vadd.f32 %v2475, %v2476
    %v2478 = vmul.f32 %v2466, 0.055555556
    %v2479 = vmul.f32 %v2477, 0.055555556
    %v2480 = vld [vmem:[%s8] sm:$0xff]
    %v2481 = vld [vmem:[%s8 + $0x8] sm:$0xff]
    %v2482 = vld [vmem:[%s8 + $0x10] sm:$0xff]
    %v2483 = vld [vmem:[%s8 + $0x18] sm:$0xff]
    %v2484 = vld [vmem:[%s9] sm:$0x1]
    %v2486 = vlaneseq
    %v2487 = vshrl.u32 %v2486, 7
    %v2488 = vsub.s32 0, %v2487
    %v2489 = vrot.slane %v2484, %v2488
    %vm2493 = vcmask 1041409
    %v2494 = vsel %vm2493, %v2479, %v2478
    %v2495 = vsel %vm481, %v2494, 0
    %2497 = vmatprep.subr.mxu0 0.0
    %2498 = vmatpush1.msra.mxu0 %v2480
    %2499 = vmatprep.subr.mxu0 0.0
    %2500 = vmatpush1.msra.mxu0 %v2481
    %2501 = vmatprep.subr.mxu0 0.0
    %2502 = vmatpush1.msra.mxu0 %v2482
    %2503 = vmatprep.subr.mxu0 0.0
    %2504 = vmatpush1.msra.mxu0 %v2483
    %2505 = vmatprep.subr.mxu0 0.0
    %2506 = vmatpush1.msra.mxu0 0.0
    %2507 = vmatprep.subr.mxu0 0.0
    %2508 = vmatpush1.msra.mxu0 0.0
    %2509 = vmatprep.subr.mxu0 0.0
    %2510 = vmatpush1.msra.mxu0 0.0
    %2511 = vmatprep.subr.mxu0 0.0
    %2512 = vmatpush1.msra.mxu0 0.0
    %2513 = vmatprep.subr.mxu0 0.0
    %2514 = vmatpush1.msra.mxu0 0.0
    %2515 = vmatprep.subr.mxu0 0.0
    %2516 = vmatpush1.msra.mxu0 0.0
    %2517 = vmatprep.subr.mxu0 0.0
    %2518 = vmatpush1.msra.mxu0 0.0
    %2519 = vmatprep.subr.mxu0 0.0
    %2520 = vmatpush1.msra.mxu0 0.0
    %2521 = vmatprep.subr.mxu0 0.0
    %2522 = vmatpush1.msra.mxu0 0.0
    %2523 = vmatprep.subr.mxu0 0.0
    %2524 = vmatpush1.msra.mxu0 0.0
    %2525 = vmatprep.subr.mxu0 0.0
    %2526 = vmatpush1.msra.mxu0 0.0
    %2527 = vmatprep.subr.mxu0 0.0
    %2528 = vmatpush1.msra.mxu0 0.0
    %2529 = vmatprep.subr.mxu0 0.0
    %2530 = vmatpush1.msra.mxu0 0.0
    %2531 = vmatprep.subr.mxu0 0.0
    %2532 = vmatpush1.msra.mxu0 0.0
    %2533 = vmatprep.subr.mxu0 0.0
    %2534 = vmatpush1.msra.mxu0 0.0
    %2535 = vmatprep.subr.mxu0 0.0
    %2536 = vmatpush1.msra.mxu0 0.0
    %2537 = vmatprep.subr.mxu0 0.0
    %2538 = vmatpush1.msra.mxu0 0.0
    %2539 = vmatprep.subr.mxu0 0.0
    %2540 = vmatpush1.msra.mxu0 0.0
    %2541 = vmatprep.subr.mxu0 0.0
    %2542 = vmatpush1.msra.mxu0 0.0
    %2543 = vmatprep.subr.mxu0 0.0
    %2544 = vmatpush1.msra.mxu0 0.0
    %2545 = vmatprep.subr.mxu0 0.0
    %2546 = vmatpush1.msra.mxu0 0.0
    %2547 = vmatprep.subr.mxu0 0.0
    %2548 = vmatpush1.msra.mxu0 0.0
    %2549 = vmatprep.subr.mxu0 0.0
    %2550 = vmatpush1.msra.mxu0 0.0
    %2551 = vmatprep.subr.mxu0 0.0
    %2552 = vmatpush1.msra.mxu0 0.0
    %2553 = vmatprep.subr.mxu0 0.0
    %2554 = vmatpush1.msra.mxu0 0.0
    %2555 = vmatprep.subr.mxu0 0.0
    %2556 = vmatpush1.msra.mxu0 0.0
    %2557 = vmatprep.subr.mxu0 0.0
    %2558 = vmatpush1.msra.mxu0 0.0
    %2559 = vmatprep.subr.mxu0 0.0
    %2560 = vmatpush1.msra.mxu0 0.0
    %2561 = vmatprep.mubr.f32.mxu0 0.0
    %2562 = vmatmul.mubr.f32.gmra.mrb[0].mxu0 %v2495
    %v2563 = vpop.f32.mrb[0].mxu0
    %v2564 = vadd.f32 %v2489, %v2563
    %v2565 = vpop.f32.mrb[0].mxu0
    %2566 = vdwg.mxu0
    %vm2567 = vcmask 9216
    %2568 = vst.msk [vmem:[#allocation2] sm:$0x3] %vm2567, %v2564
    // Predicated region
    $region42: #{tpu_custom_call.1} parent=1 // pred_check
      _
    $region43: #{tpu_custom_call.1} parent=1 // pred_check_branch
      %2570 = sbr.rel (0) target = $region45
    $region44: #{tpu_custom_call.1} parent=1 // pred_region
      %s2572 = ssub.s32 32, 32
      %2573 = vsyncadd [#allocation3], %s2572
      %s2575 = sshll.u32 [#allocation2], 4
      %s2576 = int_to_ptr.vmem [resolvable:$true] %s2575
      %2578 = dma.vmem_to_hbm [thread:$0]  %s2576, 32, %s10, [#allocation3]
    $region45: #{tpu_custom_call.1} parent=1 // pred_fallthru
      _
    // Predicated region
    $region46: #{tpu_custom_call.1} parent=1 // pred_check
      _
    $region47: #{tpu_custom_call.1} parent=1 // pred_check_branch
      %2580 = sbr.rel (0) target = $region49
    $region48: #{tpu_custom_call.1} parent=1 // pred_region
      %2581 = dma.done [#allocation3], 32
    $region49: #{tpu_custom_call.1} parent=1 // pred_fallthru
      _
    %2582 = vsyncpa [#allocation3], 1

</llo_original>
